<compile_context>
chip_gen: v7x
topology: tpu7x:2x2x1
jax: 0.10.0
libtpu: 0.0.40
codegen_flags: <defaults>
</compile_context>

<pallas_src>
import jax
import jax.numpy as jnp
import numpy as np
from jax import lax
from jax.experimental import pallas as pl
from jax.experimental.pallas import tpu as pltpu


def _pad128(n):
    return ((n + 127) // 128) * 128


CHUNK = 8  # decode steps per grid iteration (sublane-aligned)


# --------------------------------------------------------------------------
# Phase 1: serial GRU recurrence (CHUNK steps per grid iteration)
# --------------------------------------------------------------------------
def gru_recurrence_kernel(toks_ref,                     # scalar prefetch (SMEM)
                          emb_ref, wgx_ref, wgh_ref, bias_ref, h0_ref,
                          hhist_ref,
                          h_scr):
    c = pl.program_id(0)
    n_steps = hhist_ref.shape[0]                        # CHUNK
    Hp = h_scr.shape[1]

    # initialize the carried hidden state on the first chunk
    @pl.when(c == 0)
    def _():
        h_scr[...] = h0_ref[...]

    row_ids = lax.broadcasted_iota(jnp.int32, (n_steps, Hp), 0)

    def step(i, carry):
        h, hist = carry
        tok = toks_ref[c * n_steps + i]                 # token id (scalar, SMEM)

        # embedding row gathered straight out of the VMEM-resident table
        x = jnp.maximum(emb_ref[pl.ds(tok, 1), :], 0.0)     # relu, (1, Ep) f32

        # gates: x @ Wx + h @ Wh + b, fused column blocks [ r | z | n_ih | n_hh ]
        g = (jnp.dot(x.astype(jnp.bfloat16), wgx_ref[...],
                     preferred_element_type=jnp.float32)
             + jnp.dot(h.astype(jnp.bfloat16), wgh_ref[...],
                       preferred_element_type=jnp.float32)
             + bias_ref[...])                                # (1, 4*Hp) f32

        r = jax.nn.sigmoid(g[:, 0 * Hp:1 * Hp])
        z = jax.nn.sigmoid(g[:, 1 * Hp:2 * Hp])
        n = jnp.tanh(g[:, 2 * Hp:3 * Hp] + r * g[:, 3 * Hp:4 * Hp])
        h_new = (1.0 - z) * n + z * h

        # accumulate the chunk's hidden history in registers (one vreg)
        hist = jnp.where(row_ids == i, h_new, hist)
        return h_new, hist

    h_final, hist = lax.fori_loop(
        0, n_steps, step,
        (h_scr[...], jnp.zeros((n_steps, Hp), jnp.float32)),
        unroll=True)

    h_scr[...] = h_final                 # carried across chunks
    hhist_ref[...] = hist                # single dense (CHUNK, Hp) store


# --------------------------------------------------------------------------
# Phase 2: batched output projection + log-softmax (parallel over T tiles)
# --------------------------------------------------------------------------
def projection_kernel(hs_ref, wout_ref, bout_ref, logp_ref):
    logits = (jnp.dot(hs_ref[...].astype(jnp.bfloat16), wout_ref[...],
                      preferred_element_type=jnp.float32)
              + bout_ref[...])                               # (Tt, Vp)
    m = jnp.max(logits, axis=-1, keepdims=True)
    lse = m + jnp.log(jnp.sum(jnp.exp(logits - m), axis=-1, keepdims=True))
    logp_ref[...] = logits - lse


def _vmem_limit(resident_bytes):
    # resident weights + double-buffer / scheduling headroom, clamped for v7x
    return int(min(max(4 * resident_bytes + (2 << 20), 8 << 20), 48 << 20))


def decoder_gru_decode(tokens, hidden, params):
    """Run T teacher-forced decoder steps.

    tokens: int (T,), hidden: f32 (1, 1, H).
    Returns (log_probs (T, V), new_hidden (1, 1, H))."""
    d = params["dims"]
    E, H, V = d["E"], d["H"], d["V"]
    Ep, Hp, Vp = d["Ep"], d["Hp"], d["Vp"]
    T = int(tokens.shape[0])
    Tp = ((T + CHUNK - 1) // CHUNK) * CHUNK
    n_chunks = Tp // CHUNK

    toks = jnp.zeros((Tp,), jnp.int32).at[:T].set(tokens.astype(jnp.int32))
    h0 = jnp.zeros((1, Hp), jnp.float32).at[:, :H].set(hidden.reshape(1, H))

    rec_bytes = (params["emb"].size * 4 + params["wgx"].size * 2
                 + params["wgh"].size * 2 + params["bias"].size * 4
                 + Hp * 4 + 2 * CHUNK * Hp * 4)
    proj_bytes = (params["wout"].size * 2 + params["bout"].size * 4
                  + 2 * CHUNK * (Hp + Vp) * 4)

    # ---- phase 1: serial recurrence, hidden history streamed out per chunk ----
    hs = pl.pallas_call(
        gru_recurrence_kernel,
        out_shape=jax.ShapeDtypeStruct((Tp, Hp), jnp.float32),
        grid_spec=pltpu.PrefetchScalarGridSpec(
            num_scalar_prefetch=1,                           # token ids -> SMEM
            grid=(n_chunks,),
            in_specs=[
                pl.BlockSpec((Vp, Ep), lambda c, toks: (0, 0)),      # emb table (VMEM resident)
                pl.BlockSpec((Ep, 4 * Hp), lambda c, toks: (0, 0)),  # gate W, x part
                pl.BlockSpec((Hp, 4 * Hp), lambda c, toks: (0, 0)),  # gate W, h part
                pl.BlockSpec((1, 4 * Hp), lambda c, toks: (0, 0)),   # gate bias
                pl.BlockSpec((1, Hp), lambda c, toks: (0, 0)),       # initial hidden
            ],
            out_specs=pl.BlockSpec((CHUNK, Hp), lambda c, toks: (c, 0)),
            scratch_shapes=[pltpu.VMEM((1, Hp), jnp.float32)],       # carried hidden
        ),
        compiler_params=pltpu.CompilerParams(
            dimension_semantics=("arbitrary",),              # sequential carry
            vmem_limit_bytes=_vmem_limit(rec_bytes)),
    )(toks, params["emb"], params["wgx"], params["wgh"], params["bias"], h0)

    # ---- phase 2: batched projection + log-softmax, parallel over T tiles ----
    logp_pad = pl.pallas_call(
        projection_kernel,
        out_shape=jax.ShapeDtypeStruct((Tp, Vp), jnp.float32),
        grid=(n_chunks,),
        in_specs=[
            pl.BlockSpec((CHUNK, Hp), lambda i: (i, 0)),
            pl.BlockSpec((Hp, Vp), lambda i: (0, 0)),        # out proj (resident)
            pl.BlockSpec((1, Vp), lambda i: (0, 0)),         # out bias (padded = -1e9)
        ],
        out_specs=pl.BlockSpec((CHUNK, Vp), lambda i: (i, 0)),
        compiler_params=pltpu.CompilerParams(
            dimension_semantics=("parallel",),               # shards across TCs on v7x
            vmem_limit_bytes=_vmem_limit(proj_bytes)),
    )(hs, params["wout"], params["bout"])

    new_hidden = hs[T - 1, :H].reshape(1, 1, H)
    return logp_pad[:T, :V], new_hidden


def decoder_gru_forward(seq_input, hidden_layer, params):
    """Single-step forward matching PyTorch DecoderGRU.forward."""
    logp, h_new = decoder_gru_decode(seq_input.reshape(1), hidden_layer, params)
    return logp, h_new                                       # (1, V), (1, 1, H)


def make_params(key, embedding_dim, hidden_dim, output_dim):
    E, H, V = embedding_dim, hidden_dim, output_dim
    Ep, Hp, Vp = _pad128(E), _pad128(H), _pad128(V)
    ks = jax.random.split(key, 7)
    s = 1.0 / np.sqrt(H)
    emb = np.asarray(jax.random.normal(ks[0], (V, E), jnp.float32))
    w_ih = np.asarray(jax.random.uniform(ks[1], (3 * H, E), jnp.float32, -s, s))
    w_hh = np.asarray(jax.random.uniform(ks[2], (3 * H, H), jnp.float32, -s, s))
    b_ih = np.asarray(jax.random.uniform(ks[3], (3 * H,), jnp.float32, -s, s))
    b_hh = np.asarray(jax.random.uniform(ks[4], (3 * H,), jnp.float32, -s, s))
    w_out = np.asarray(jax.random.uniform(ks[5], (V, H), jnp.float32, -s, s))
    b_out = np.asarray(jax.random.uniform(ks[6], (V,), jnp.float32, -s, s))

    # padded embedding table (padded rows/cols = 0), f32 for clean row gather
    emb_p = np.zeros((Vp, Ep), np.float32)
    emb_p[:V, :E] = emb

    # split fused gate weights; column blocks = [ r | z | n_ih | n_hh ]
    wgx = np.zeros((Ep, 4 * Hp), np.float32)
    wgx[:E, 0 * Hp:0 * Hp + H] = w_ih[0 * H:1 * H].T
    wgx[:E, 1 * Hp:1 * Hp + H] = w_ih[1 * H:2 * H].T
    wgx[:E, 2 * Hp:2 * Hp + H] = w_ih[2 * H:3 * H].T

    wgh = np.zeros((Hp, 4 * Hp), np.float32)
    wgh[:H, 0 * Hp:0 * Hp + H] = w_hh[0 * H:1 * H].T
    wgh[:H, 1 * Hp:1 * Hp + H] = w_hh[1 * H:2 * H].T
    wgh[:H, 3 * Hp:3 * Hp + H] = w_hh[2 * H:3 * H].T

    bias = np.zeros((1, 4 * Hp), np.float32)
    bias[0, 0 * Hp:0 * Hp + H] = b_ih[0 * H:1 * H] + b_hh[0 * H:1 * H]
    bias[0, 1 * Hp:1 * Hp + H] = b_ih[1 * H:2 * H] + b_hh[1 * H:2 * H]
    bias[0, 2 * Hp:2 * Hp + H] = b_ih[2 * H:3 * H]
    bias[0, 3 * Hp:3 * Hp + H] = b_hh[2 * H:3 * H]

    wout = np.zeros((Hp, Vp), np.float32)
    wout[:H, :V] = w_out.T
    bout = np.full((1, Vp), -1e9, np.float32)        # padded vocab cols masked
    bout[0, :V] = b_out

    return {
        "emb": jnp.asarray(emb_p, jnp.float32),
        "wgx": jnp.asarray(wgx, jnp.bfloat16),
        "wgh": jnp.asarray(wgh, jnp.bfloat16),
        "bias": jnp.asarray(bias),
        "wout": jnp.asarray(wout, jnp.bfloat16),
        "bout": jnp.asarray(bout),
        "dims": {"E": E, "H": H, "V": V, "Ep": Ep, "Hp": Hp, "Vp": Vp},
    }


def reference_decode(tokens, hidden, params):
    """Pure-JAX reference with identical bf16 quantization, for validation."""
    d = params["dims"]
    H, V, Hp = d["H"], d["V"], d["Hp"]
    emb = params["emb"]
    wgx = params["wgx"].astype(jnp.float32)
    wgh = params["wgh"].astype(jnp.float32)
    wout = params["wout"].astype(jnp.float32)
    bias, bout = params["bias"], params["bout"]
    h = jnp.zeros((1, Hp), jnp.float32).at[:, :H].set(hidden.reshape(1, H))
    outs = []
    for t in range(int(tokens.shape[0])):
        x = jnp.maximum(emb[tokens[t]][None, :], 0.0)
        xb = x.astype(jnp.bfloat16).astype(jnp.float32)
        hb = h.astype(jnp.bfloat16).astype(jnp.float32)
        g = xb @ wgx + hb @ wgh + bias
        r = jax.nn.sigmoid(g[:, 0 * Hp:1 * Hp])
        z = jax.nn.sigmoid(g[:, 1 * Hp:2 * Hp])
        n = jnp.tanh(g[:, 2 * Hp:3 * Hp] + r * g[:, 3 * Hp:4 * Hp])
        h = (1.0 - z) * n + z * h
        logits = h.astype(jnp.bfloat16).astype(jnp.float32) @ wout + bout
        logp = logits - jax.scipy.special.logsumexp(logits, axis=1, keepdims=True)
        outs.append(logp[:, :V])
    return jnp.concatenate(outs, axis=0), h[:, :H].reshape(1, 1, H)


if __name__ == "__main__":
    embedding_dim, hidden_dim, output_dim = 32, 32, 64    # E, H, V (vocab)

    key = jax.random.PRNGKey(0)
    pkey, hkey, tkey = jax.random.split(key, 3)
    params = make_params(pkey, embedding_dim, hidden_dim, output_dim)
    hidden0 = jax.random.normal(hkey, (1, 1, hidden_dim), jnp.float32)

    # --- single-step forward (== PyTorch DecoderGRU.forward) ---
    seq_input = jnp.array([3], dtype=jnp.int32)
    logp1, h1 = decoder_gru_forward(seq_input, hidden0, params)
    jax.block_until_ready((logp1, h1))

    # --- multi-step decode: T steps, 2 pallas_calls total ---
    T = 8
    tokens = jax.random.randint(tkey, (T,), 0, output_dim, dtype=jnp.int32)
    logps, hT = decoder_gru_decode(tokens, hidden0, params)
    jax.block_until_ready((logps, hT))

    ref_logp1, ref_h1 = reference_decode(seq_input, hidden0, params)
    ref_logps, ref_hT = reference_decode(tokens, hidden0, params)

    np.testing.assert_allclose(np.asarray(logp1), np.asarray(ref_logp1), rtol=3e-3, atol=3e-3)
    np.testing.assert_allclose(np.asarray(h1), np.asarray(ref_h1), rtol=3e-3, atol=3e-3)
    np.testing.assert_allclose(np.asarray(logps), np.asarray(ref_logps), rtol=3e-3, atol=3e-3)
    np.testing.assert_allclose(np.asarray(hT), np.asarray(ref_hT), rtol=3e-3, atol=3e-3)
    assert logp1.shape == (1, output_dim)
    assert h1.shape == (1, 1, hidden_dim)
    assert logps.shape == (T, output_dim)
    assert hT.shape == (1, 1, hidden_dim)
    print("KERNEL_OK")
</pallas_src>

<mosaic_0001>
module attributes {stable_mosaic.version = 11 : i64} {
  func.func @gru_recurrence_kernel(%arg0: i32, %arg1: memref<8xi32, #tpu.memory_space<smem>>, %arg2: memref<128x128xf32, #tpu.memory_space<vmem>>, %arg3: memref<128x512xbf16, #tpu.memory_space<vmem>>, %arg4: memref<128x512xbf16, #tpu.memory_space<vmem>>, %arg5: memref<1x512xf32, #tpu.memory_space<vmem>>, %arg6: memref<1x128xf32, #tpu.memory_space<vmem>>, %arg7: memref<8x128xf32, #tpu.memory_space<vmem>>, %arg8: memref<1x128xf32, #tpu.memory_space<vmem>>) attributes {dimension_semantics = [#tpu.dimension_semantics<arbitrary>], iteration_bounds = array<i64: 1>, scalar_prefetch = 1 : i64, scratch_operands = 1 : i64, tpu.core_type = #tpu.core_type<tc>, window_params = [{pipeline_mode = #tpu.pipeline_mode<synchronous>, transform_indices = @transform_0, window_bounds = array<i64: 128, 128>}, {pipeline_mode = #tpu.pipeline_mode<synchronous>, transform_indices = @transform_1, window_bounds = array<i64: 128, 512>}, {pipeline_mode = #tpu.pipeline_mode<synchronous>, transform_indices = @transform_2, window_bounds = array<i64: 128, 512>}, {pipeline_mode = #tpu.pipeline_mode<synchronous>, transform_indices = @transform_3, window_bounds = array<i64: 1, 512>}, {pipeline_mode = #tpu.pipeline_mode<synchronous>, transform_indices = @transform_4, window_bounds = array<i64: 1, 128>}, {transform_indices = @transform_5, window_bounds = array<i64: 8, 128>}]} {
    %c0_i32 = arith.constant 0 : i32
    %0 = arith.cmpi eq, %arg0, %c0_i32 : i32
    %1 = arith.extui %0 : i1 to i32
    %c0_i32_0 = arith.constant 0 : i32
    %2 = arith.cmpi ne, %1, %c0_i32_0 : i32
    scf.if %2 {
      %c0_119 = arith.constant 0 : index
      %c0_120 = arith.constant 0 : index
      %360 = vector.load %arg6[%c0_119, %c0_120] : memref<1x128xf32, #tpu.memory_space<vmem>>, vector<1x128xf32>
      %c0_121 = arith.constant 0 : index
      %c0_122 = arith.constant 0 : index
      %361 = vector.load %arg8[%c0_121, %c0_122] : memref<1x128xf32, #tpu.memory_space<vmem>>, vector<1x128xf32>
      tpu.vector_store %arg8[%c0_121, %c0_122], %360 {strides = array<i32>} : memref<1x128xf32, #tpu.memory_space<vmem>>, vector<1x128xf32>,
    } else {
    }
    %3 = tpu.iota {dimensions = array<i32: 0>} : vector<8x128xi32>
    %c0 = arith.constant 0 : index
    %c0_1 = arith.constant 0 : index
    %4 = vector.load %arg8[%c0, %c0_1] : memref<1x128xf32, #tpu.memory_space<vmem>>, vector<1x128xf32>
    %cst = arith.constant 0.000000e+00 : f32
    %5 = vector.broadcast %cst : f32 to vector<8x128xf32>
    %c0_i32_2 = arith.constant 0 : i32
    %c8_i32 = arith.constant 8 : i32
    %6 = arith.muli %arg0, %c8_i32 : i32
    %7 = arith.addi %6, %c0_i32_2 : i32
    %8 = arith.index_cast %7 : i32 to index
    %9 = memref.load %arg1[%8] : memref<8xi32, #tpu.memory_space<smem>>
    %10 = arith.index_cast %9 : i32 to index
    %c0_3 = arith.constant 0 : index
    %11 = vector.load %arg2[%10, %c0_3] : memref<128x128xf32, #tpu.memory_space<vmem>>, vector<1x128xf32>
    %cst_4 = arith.constant 0.000000e+00 : f32
    %12 = vector.broadcast %cst_4 : f32 to vector<1x128xf32>
    %13 = arith.maximumf %11, %12 : vector<1x128xf32>
    %14 = arith.truncf %13 : vector<1x128xf32> to vector<1x128xbf16>
    %c0_5 = arith.constant 0 : index
    %c0_6 = arith.constant 0 : index
    %15 = vector.load %arg3[%c0_5, %c0_6] : memref<128x512xbf16, #tpu.memory_space<vmem>>, vector<128x512xbf16>
    %cst_7 = arith.constant dense<0.000000e+00> : vector<1x512xf32>
    %16 = tpu.matmul %14, %15, %cst_7 {dimension_numbers = #tpu.dot_dimension_numbers<[1], [0], [0], [1], [0, 0, 1, 1], [], []>} : vector<1x128xbf16>, vector<128x512xbf16>, vector<1x512xf32> -> vector<1x512xf32>
    %17 = arith.truncf %4 : vector<1x128xf32> to vector<1x128xbf16>
    %c0_8 = arith.constant 0 : index
    %c0_9 = arith.constant 0 : index
    %18 = vector.load %arg4[%c0_8, %c0_9] : memref<128x512xbf16, #tpu.memory_space<vmem>>, vector<128x512xbf16>
    %cst_10 = arith.constant dense<0.000000e+00> : vector<1x512xf32>
    %19 = tpu.matmul %17, %18, %cst_10 {dimension_numbers = #tpu.dot_dimension_numbers<[1], [0], [0], [1], [0, 0, 1, 1], [], []>} : vector<1x128xbf16>, vector<128x512xbf16>, vector<1x512xf32> -> vector<1x512xf32>
    %20 = arith.addf %16, %19 : vector<1x512xf32>
    %c0_11 = arith.constant 0 : index
    %c0_12 = arith.constant 0 : index
    %21 = vector.load %arg5[%c0_11, %c0_12] : memref<1x512xf32, #tpu.memory_space<vmem>>, vector<1x512xf32>
    %22 = arith.addf %20, %21 : vector<1x512xf32>
    %23 = vector.extract_strided_slice %22 {offsets = [0, 0], sizes = [1, 128], strides = [1, 1]} : vector<1x512xf32> to vector<1x128xf32>
    %24 = arith.negf %23 : vector<1x128xf32>
    %25 = math.exp %24 : vector<1x128xf32>
    %cst_13 = arith.constant 1.000000e+00 : f32
    %26 = vector.broadcast %cst_13 : f32 to vector<1x128xf32>
    %27 = arith.addf %26, %25 : vector<1x128xf32>
    %28 = arith.divf %26, %27 : vector<1x128xf32>
    %29 = vector.extract_strided_slice %22 {offsets = [0, 128], sizes = [1, 128], strides = [1, 1]} : vector<1x512xf32> to vector<1x128xf32>
    %30 = arith.negf %29 : vector<1x128xf32>
    %31 = math.exp %30 : vector<1x128xf32>
    %cst_14 = arith.constant 1.000000e+00 : f32
    %32 = vector.broadcast %cst_14 : f32 to vector<1x128xf32>
    %33 = arith.addf %32, %31 : vector<1x128xf32>
    %34 = arith.divf %32, %33 : vector<1x128xf32>
    %35 = vector.extract_strided_slice %22 {offsets = [0, 256], sizes = [1, 128], strides = [1, 1]} : vector<1x512xf32> to vector<1x128xf32>
    %36 = vector.extract_strided_slice %22 {offsets = [0, 384], sizes = [1, 128], strides = [1, 1]} : vector<1x512xf32> to vector<1x128xf32>
    %37 = arith.mulf %28, %36 : vector<1x128xf32>
    %38 = arith.addf %35, %37 : vector<1x128xf32>
    %39 = math.tanh %38 : vector<1x128xf32>
    %cst_15 = arith.constant 1.000000e+00 : f32
    %40 = vector.broadcast %cst_15 : f32 to vector<1x128xf32>
    %41 = arith.subf %40, %34 : vector<1x128xf32>
    %42 = arith.mulf %41, %39 : vector<1x128xf32>
    %43 = arith.mulf %34, %4 : vector<1x128xf32>
    %44 = arith.addf %42, %43 : vector<1x128xf32>
    %45 = vector.broadcast %c0_i32_2 : i32 to vector<8x128xi32>
    %46 = arith.cmpi eq, %3, %45 : vector<8x128xi32>
    %47 = vector.shape_cast %44 : vector<1x128xf32> to vector<1x128xf32>
    %48 = vector.broadcast %47 : vector<1x128xf32> to vector<8x128xf32>
    %49 = arith.select %46, %48, %5 : vector<8x128xi1>, vector<8x128xf32>
    %c1_i32 = arith.constant 1 : i32
    %c8_i32_16 = arith.constant 8 : i32
    %50 = arith.muli %arg0, %c8_i32_16 : i32
    %51 = arith.addi %50, %c1_i32 : i32
    %52 = arith.index_cast %51 : i32 to index
    %53 = memref.load %arg1[%52] : memref<8xi32, #tpu.memory_space<smem>>
    %54 = arith.index_cast %53 : i32 to index
    %c0_17 = arith.constant 0 : index
    %55 = vector.load %arg2[%54, %c0_17] : memref<128x128xf32, #tpu.memory_space<vmem>>, vector<1x128xf32>
    %cst_18 = arith.constant 0.000000e+00 : f32
    %56 = vector.broadcast %cst_18 : f32 to vector<1x128xf32>
    %57 = arith.maximumf %55, %56 : vector<1x128xf32>
    %58 = arith.truncf %57 : vector<1x128xf32> to vector<1x128xbf16>
    %c0_19 = arith.constant 0 : index
    %c0_20 = arith.constant 0 : index
    %59 = vector.load %arg3[%c0_19, %c0_20] : memref<128x512xbf16, #tpu.memory_space<vmem>>, vector<128x512xbf16>
    %cst_21 = arith.constant dense<0.000000e+00> : vector<1x512xf32>
    %60 = tpu.matmul %58, %59, %cst_21 {dimension_numbers = #tpu.dot_dimension_numbers<[1], [0], [0], [1], [0, 0, 1, 1], [], []>} : vector<1x128xbf16>, vector<128x512xbf16>, vector<1x512xf32> -> vector<1x512xf32>
    %61 = arith.truncf %44 : vector<1x128xf32> to vector<1x128xbf16>
    %c0_22 = arith.constant 0 : index
    %c0_23 = arith.constant 0 : index
    %62 = vector.load %arg4[%c0_22, %c0_23] : memref<128x512xbf16, #tpu.memory_space<vmem>>, vector<128x512xbf16>
    %cst_24 = arith.constant dense<0.000000e+00> : vector<1x512xf32>
    %63 = tpu.matmul %61, %62, %cst_24 {dimension_numbers = #tpu.dot_dimension_numbers<[1], [0], [0], [1], [0, 0, 1, 1], [], []>} : vector<1x128xbf16>, vector<128x512xbf16>, vector<1x512xf32> -> vector<1x512xf32>
    %64 = arith.addf %60, %63 : vector<1x512xf32>
    %c0_25 = arith.constant 0 : index
    %c0_26 = arith.constant 0 : index
    %65 = vector.load %arg5[%c0_25, %c0_26] : memref<1x512xf32, #tpu.memory_space<vmem>>, vector<1x512xf32>
    %66 = arith.addf %64, %65 : vector<1x512xf32>
    %67 = vector.extract_strided_slice %66 {offsets = [0, 0], sizes = [1, 128], strides = [1, 1]} : vector<1x512xf32> to vector<1x128xf32>
    %68 = arith.negf %67 : vector<1x128xf32>
    %69 = math.exp %68 : vector<1x128xf32>
    %cst_27 = arith.constant 1.000000e+00 : f32
    %70 = vector.broadcast %cst_27 : f32 to vector<1x128xf32>
    %71 = arith.addf %70, %69 : vector<1x128xf32>
    %72 = arith.divf %70, %71 : vector<1x128xf32>
    %73 = vector.extract_strided_slice %66 {offsets = [0, 128], sizes = [1, 128], strides = [1, 1]} : vector<1x512xf32> to vector<1x128xf32>
    %74 = arith.negf %73 : vector<1x128xf32>
    %75 = math.exp %74 : vector<1x128xf32>
    %cst_28 = arith.constant 1.000000e+00 : f32
    %76 = vector.broadcast %cst_28 : f32 to vector<1x128xf32>
    %77 = arith.addf %76, %75 : vector<1x128xf32>
    %78 = arith.divf %76, %77 : vector<1x128xf32>
    %79 = vector.extract_strided_slice %66 {offsets = [0, 256], sizes = [1, 128], strides = [1, 1]} : vector<1x512xf32> to vector<1x128xf32>
    %80 = vector.extract_strided_slice %66 {offsets = [0, 384], sizes = [1, 128], strides = [1, 1]} : vector<1x512xf32> to vector<1x128xf32>
    %81 = arith.mulf %72, %80 : vector<1x128xf32>
    %82 = arith.addf %79, %81 : vector<1x128xf32>
    %83 = math.tanh %82 : vector<1x128xf32>
    %cst_29 = arith.constant 1.000000e+00 : f32
    %84 = vector.broadcast %cst_29 : f32 to vector<1x128xf32>
    %85 = arith.subf %84, %78 : vector<1x128xf32>
    %86 = arith.mulf %85, %83 : vector<1x128xf32>
    %87 = arith.mulf %78, %44 : vector<1x128xf32>
    %88 = arith.addf %86, %87 : vector<1x128xf32>
    %89 = vector.broadcast %c1_i32 : i32 to vector<8x128xi32>
    %90 = arith.cmpi eq, %3, %89 : vector<8x128xi32>
    %91 = vector.shape_cast %88 : vector<1x128xf32> to vector<1x128xf32>
    %92 = vector.broadcast %91 : vector<1x128xf32> to vector<8x128xf32>
    %93 = arith.select %90, %92, %49 : vector<8x128xi1>, vector<8x128xf32>
    %c2_i32 = arith.constant 2 : i32
    %c8_i32_30 = arith.constant 8 : i32
    %94 = arith.muli %arg0, %c8_i32_30 : i32
    %95 = arith.addi %94, %c2_i32 : i32
    %96 = arith.index_cast %95 : i32 to index
    %97 = memref.load %arg1[%96] : memref<8xi32, #tpu.memory_space<smem>>
    %98 = arith.index_cast %97 : i32 to index
    %c0_31 = arith.constant 0 : index
    %99 = vector.load %arg2[%98, %c0_31] : memref<128x128xf32, #tpu.memory_space<vmem>>, vector<1x128xf32>
    %cst_32 = arith.constant 0.000000e+00 : f32
    %100 = vector.broadcast %cst_32 : f32 to vector<1x128xf32>
    %101 = arith.maximumf %99, %100 : vector<1x128xf32>
    %102 = arith.truncf %101 : vector<1x128xf32> to vector<1x128xbf16>
    %c0_33 = arith.constant 0 : index
    %c0_34 = arith.constant 0 : index
    %103 = vector.load %arg3[%c0_33, %c0_34] : memref<128x512xbf16, #tpu.memory_space<vmem>>, vector<128x512xbf16>
    %cst_35 = arith.constant dense<0.000000e+00> : vector<1x512xf32>
    %104 = tpu.matmul %102, %103, %cst_35 {dimension_numbers = #tpu.dot_dimension_numbers<[1], [0], [0], [1], [0, 0, 1, 1], [], []>} : vector<1x128xbf16>, vector<128x512xbf16>, vector<1x512xf32> -> vector<1x512xf32>
    %105 = arith.truncf %88 : vector<1x128xf32> to vector<1x128xbf16>
    %c0_36 = arith.constant 0 : index
    %c0_37 = arith.constant 0 : index
    %106 = vector.load %arg4[%c0_36, %c0_37] : memref<128x512xbf16, #tpu.memory_space<vmem>>, vector<128x512xbf16>
    %cst_38 = arith.constant dense<0.000000e+00> : vector<1x512xf32>
    %107 = tpu.matmul %105, %106, %cst_38 {dimension_numbers = #tpu.dot_dimension_numbers<[1], [0], [0], [1], [0, 0, 1, 1], [], []>} : vector<1x128xbf16>, vector<128x512xbf16>, vector<1x512xf32> -> vector<1x512xf32>
    %108 = arith.addf %104, %107 : vector<1x512xf32>
    %c0_39 = arith.constant 0 : index
    %c0_40 = arith.constant 0 : index
    %109 = vector.load %arg5[%c0_39, %c0_40] : memref<1x512xf32, #tpu.memory_space<vmem>>, vector<1x512xf32>
    %110 = arith.addf %108, %109 : vector<1x512xf32>
    %111 = vector.extract_strided_slice %110 {offsets = [0, 0], sizes = [1, 128], strides = [1, 1]} : vector<1x512xf32> to vector<1x128xf32>
    %112 = arith.negf %111 : vector<1x128xf32>
    %113 = math.exp %112 : vector<1x128xf32>
    %cst_41 = arith.constant 1.000000e+00 : f32
    %114 = vector.broadcast %cst_41 : f32 to vector<1x128xf32>
    %115 = arith.addf %114, %113 : vector<1x128xf32>
    %116 = arith.divf %114, %115 : vector<1x128xf32>
    %117 = vector.extract_strided_slice %110 {offsets = [0, 128], sizes = [1, 128], strides = [1, 1]} : vector<1x512xf32> to vector<1x128xf32>
    %118 = arith.negf %117 : vector<1x128xf32>
    %119 = math.exp %118 : vector<1x128xf32>
    %cst_42 = arith.constant 1.000000e+00 : f32
    %120 = vector.broadcast %cst_42 : f32 to vector<1x128xf32>
    %121 = arith.addf %120, %119 : vector<1x128xf32>
    %122 = arith.divf %120, %121 : vector<1x128xf32>
    %123 = vector.extract_strided_slice %110 {offsets = [0, 256], sizes = [1, 128], strides = [1, 1]} : vector<1x512xf32> to vector<1x128xf32>
    %124 = vector.extract_strided_slice %110 {offsets = [0, 384], sizes = [1, 128], strides = [1, 1]} : vector<1x512xf32> to vector<1x128xf32>
    %125 = arith.mulf %116, %124 : vector<1x128xf32>
    %126 = arith.addf %123, %125 : vector<1x128xf32>
    %127 = math.tanh %126 : vector<1x128xf32>
    %cst_43 = arith.constant 1.000000e+00 : f32
    %128 = vector.broadcast %cst_43 : f32 to vector<1x128xf32>
    %129 = arith.subf %128, %122 : vector<1x128xf32>
    %130 = arith.mulf %129, %127 : vector<1x128xf32>
    %131 = arith.mulf %122, %88 : vector<1x128xf32>
    %132 = arith.addf %130, %131 : vector<1x128xf32>
    %133 = vector.broadcast %c2_i32 : i32 to vector<8x128xi32>
    %134 = arith.cmpi eq, %3, %133 : vector<8x128xi32>
    %135 = vector.shape_cast %132 : vector<1x128xf32> to vector<1x128xf32>
    %136 = vector.broadcast %135 : vector<1x128xf32> to vector<8x128xf32>
    %137 = arith.select %134, %136, %93 : vector<8x128xi1>, vector<8x128xf32>
    %c3_i32 = arith.constant 3 : i32
    %c8_i32_44 = arith.constant 8 : i32
    %138 = arith.muli %arg0, %c8_i32_44 : i32
    %139 = arith.addi %138, %c3_i32 : i32
    %140 = arith.index_cast %139 : i32 to index
    %141 = memref.load %arg1[%140] : memref<8xi32, #tpu.memory_space<smem>>
    %142 = arith.index_cast %141 : i32 to index
    %c0_45 = arith.constant 0 : index
    %143 = vector.load %arg2[%142, %c0_45] : memref<128x128xf32, #tpu.memory_space<vmem>>, vector<1x128xf32>
    %cst_46 = arith.constant 0.000000e+00 : f32
    %144 = vector.broadcast %cst_46 : f32 to vector<1x128xf32>
    %145 = arith.maximumf %143, %144 : vector<1x128xf32>
    %146 = arith.truncf %145 : vector<1x128xf32> to vector<1x128xbf16>
    %c0_47 = arith.constant 0 : index
    %c0_48 = arith.constant 0 : index
    %147 = vector.load %arg3[%c0_47, %c0_48] : memref<128x512xbf16, #tpu.memory_space<vmem>>, vector<128x512xbf16>
    %cst_49 = arith.constant dense<0.000000e+00> : vector<1x512xf32>
    %148 = tpu.matmul %146, %147, %cst_49 {dimension_numbers = #tpu.dot_dimension_numbers<[1], [0], [0], [1], [0, 0, 1, 1], [], []>} : vector<1x128xbf16>, vector<128x512xbf16>, vector<1x512xf32> -> vector<1x512xf32>
    %149 = arith.truncf %132 : vector<1x128xf32> to vector<1x128xbf16>
    %c0_50 = arith.constant 0 : index
    %c0_51 = arith.constant 0 : index
    %150 = vector.load %arg4[%c0_50, %c0_51] : memref<128x512xbf16, #tpu.memory_space<vmem>>, vector<128x512xbf16>
    %cst_52 = arith.constant dense<0.000000e+00> : vector<1x512xf32>
    %151 = tpu.matmul %149, %150, %cst_52 {dimension_numbers = #tpu.dot_dimension_numbers<[1], [0], [0], [1], [0, 0, 1, 1], [], []>} : vector<1x128xbf16>, vector<128x512xbf16>, vector<1x512xf32> -> vector<1x512xf32>
    %152 = arith.addf %148, %151 : vector<1x512xf32>
    %c0_53 = arith.constant 0 : index
    %c0_54 = arith.constant 0 : index
    %153 = vector.load %arg5[%c0_53, %c0_54] : memref<1x512xf32, #tpu.memory_space<vmem>>, vector<1x512xf32>
    %154 = arith.addf %152, %153 : vector<1x512xf32>
    %155 = vector.extract_strided_slice %154 {offsets = [0, 0], sizes = [1, 128], strides = [1, 1]} : vector<1x512xf32> to vector<1x128xf32>
    %156 = arith.negf %155 : vector<1x128xf32>
    %157 = math.exp %156 : vector<1x128xf32>
    %cst_55 = arith.constant 1.000000e+00 : f32
    %158 = vector.broadcast %cst_55 : f32 to vector<1x128xf32>
    %159 = arith.addf %158, %157 : vector<1x128xf32>
    %160 = arith.divf %158, %159 : vector<1x128xf32>
    %161 = vector.extract_strided_slice %154 {offsets = [0, 128], sizes = [1, 128], strides = [1, 1]} : vector<1x512xf32> to vector<1x128xf32>
    %162 = arith.negf %161 : vector<1x128xf32>
    %163 = math.exp %162 : vector<1x128xf32>
    %cst_56 = arith.constant 1.000000e+00 : f32
    %164 = vector.broadcast %cst_56 : f32 to vector<1x128xf32>
    %165 = arith.addf %164, %163 : vector<1x128xf32>
    %166 = arith.divf %164, %165 : vector<1x128xf32>
    %167 = vector.extract_strided_slice %154 {offsets = [0, 256], sizes = [1, 128], strides = [1, 1]} : vector<1x512xf32> to vector<1x128xf32>
    %168 = vector.extract_strided_slice %154 {offsets = [0, 384], sizes = [1, 128], strides = [1, 1]} : vector<1x512xf32> to vector<1x128xf32>
    %169 = arith.mulf %160, %168 : vector<1x128xf32>
    %170 = arith.addf %167, %169 : vector<1x128xf32>
    %171 = math.tanh %170 : vector<1x128xf32>
    %cst_57 = arith.constant 1.000000e+00 : f32
    %172 = vector.broadcast %cst_57 : f32 to vector<1x128xf32>
    %173 = arith.subf %172, %166 : vector<1x128xf32>
    %174 = arith.mulf %173, %171 : vector<1x128xf32>
    %175 = arith.mulf %166, %132 : vector<1x128xf32>
    %176 = arith.addf %174, %175 : vector<1x128xf32>
    %177 = vector.broadcast %c3_i32 : i32 to vector<8x128xi32>
    %178 = arith.cmpi eq, %3, %177 : vector<8x128xi32>
    %179 = vector.shape_cast %176 : vector<1x128xf32> to vector<1x128xf32>
    %180 = vector.broadcast %179 : vector<1x128xf32> to vector<8x128xf32>
    %181 = arith.select %178, %180, %137 : vector<8x128xi1>, vector<8x128xf32>
    %c4_i32 = arith.constant 4 : i32
    %c8_i32_58 = arith.constant 8 : i32
    %182 = arith.muli %arg0, %c8_i32_58 : i32
    %183 = arith.addi %182, %c4_i32 : i32
    %184 = arith.index_cast %183 : i32 to index
    %185 = memref.load %arg1[%184] : memref<8xi32, #tpu.memory_space<smem>>
    %186 = arith.index_cast %185 : i32 to index
    %c0_59 = arith.constant 0 : index
    %187 = vector.load %arg2[%186, %c0_59] : memref<128x128xf32, #tpu.memory_space<vmem>>, vector<1x128xf32>
    %cst_60 = arith.constant 0.000000e+00 : f32
    %188 = vector.broadcast %cst_60 : f32 to vector<1x128xf32>
    %189 = arith.maximumf %187, %188 : vector<1x128xf32>
    %190 = arith.truncf %189 : vector<1x128xf32> to vector<1x128xbf16>
    %c0_61 = arith.constant 0 : index
    %c0_62 = arith.constant 0 : index
    %191 = vector.load %arg3[%c0_61, %c0_62] : memref<128x512xbf16, #tpu.memory_space<vmem>>, vector<128x512xbf16>
    %cst_63 = arith.constant dense<0.000000e+00> : vector<1x512xf32>
    %192 = tpu.matmul %190, %191, %cst_63 {dimension_numbers = #tpu.dot_dimension_numbers<[1], [0], [0], [1], [0, 0, 1, 1], [], []>} : vector<1x128xbf16>, vector<128x512xbf16>, vector<1x512xf32> -> vector<1x512xf32>
    %193 = arith.truncf %176 : vector<1x128xf32> to vector<1x128xbf16>
    %c0_64 = arith.constant 0 : index
    %c0_65 = arith.constant 0 : index
    %194 = vector.load %arg4[%c0_64, %c0_65] : memref<128x512xbf16, #tpu.memory_space<vmem>>, vector<128x512xbf16>
    %cst_66 = arith.constant dense<0.000000e+00> : vector<1x512xf32>
    %195 = tpu.matmul %193, %194, %cst_66 {dimension_numbers = #tpu.dot_dimension_numbers<[1], [0], [0], [1], [0, 0, 1, 1], [], []>} : vector<1x128xbf16>, vector<128x512xbf16>, vector<1x512xf32> -> vector<1x512xf32>
    %196 = arith.addf %192, %195 : vector<1x512xf32>
    %c0_67 = arith.constant 0 : index
    %c0_68 = arith.constant 0 : index
    %197 = vector.load %arg5[%c0_67, %c0_68] : memref<1x512xf32, #tpu.memory_space<vmem>>, vector<1x512xf32>
    %198 = arith.addf %196, %197 : vector<1x512xf32>
    %199 = vector.extract_strided_slice %198 {offsets = [0, 0], sizes = [1, 128], strides = [1, 1]} : vector<1x512xf32> to vector<1x128xf32>
    %200 = arith.negf %199 : vector<1x128xf32>
    %201 = math.exp %200 : vector<1x128xf32>
    %cst_69 = arith.constant 1.000000e+00 : f32
    %202 = vector.broadcast %cst_69 : f32 to vector<1x128xf32>
    %203 = arith.addf %202, %201 : vector<1x128xf32>
    %204 = arith.divf %202, %203 : vector<1x128xf32>
    %205 = vector.extract_strided_slice %198 {offsets = [0, 128], sizes = [1, 128], strides = [1, 1]} : vector<1x512xf32> to vector<1x128xf32>
    %206 = arith.negf %205 : vector<1x128xf32>
    %207 = math.exp %206 : vector<1x128xf32>
    %cst_70 = arith.constant 1.000000e+00 : f32
    %208 = vector.broadcast %cst_70 : f32 to vector<1x128xf32>
    %209 = arith.addf %208, %207 : vector<1x128xf32>
    %210 = arith.divf %208, %209 : vector<1x128xf32>
    %211 = vector.extract_strided_slice %198 {offsets = [0, 256], sizes = [1, 128], strides = [1, 1]} : vector<1x512xf32> to vector<1x128xf32>
    %212 = vector.extract_strided_slice %198 {offsets = [0, 384], sizes = [1, 128], strides = [1, 1]} : vector<1x512xf32> to vector<1x128xf32>
    %213 = arith.mulf %204, %212 : vector<1x128xf32>
    %214 = arith.addf %211, %213 : vector<1x128xf32>
    %215 = math.tanh %214 : vector<1x128xf32>
    %cst_71 = arith.constant 1.000000e+00 : f32
    %216 = vector.broadcast %cst_71 : f32 to vector<1x128xf32>
    %217 = arith.subf %216, %210 : vector<1x128xf32>
    %218 = arith.mulf %217, %215 : vector<1x128xf32>
    %219 = arith.mulf %210, %176 : vector<1x128xf32>
    %220 = arith.addf %218, %219 : vector<1x128xf32>
    %221 = vector.broadcast %c4_i32 : i32 to vector<8x128xi32>
    %222 = arith.cmpi eq, %3, %221 : vector<8x128xi32>
    %223 = vector.shape_cast %220 : vector<1x128xf32> to vector<1x128xf32>
    %224 = vector.broadcast %223 : vector<1x128xf32> to vector<8x128xf32>
    %225 = arith.select %222, %224, %181 : vector<8x128xi1>, vector<8x128xf32>
    %c5_i32 = arith.constant 5 : i32
    %c8_i32_72 = arith.constant 8 : i32
    %226 = arith.muli %arg0, %c8_i32_72 : i32
    %227 = arith.addi %226, %c5_i32 : i32
    %228 = arith.index_cast %227 : i32 to index
    %229 = memref.load %arg1[%228] : memref<8xi32, #tpu.memory_space<smem>>
    %230 = arith.index_cast %229 : i32 to index
    %c0_73 = arith.constant 0 : index
    %231 = vector.load %arg2[%230, %c0_73] : memref<128x128xf32, #tpu.memory_space<vmem>>, vector<1x128xf32>
    %cst_74 = arith.constant 0.000000e+00 : f32
    %232 = vector.broadcast %cst_74 : f32 to vector<1x128xf32>
    %233 = arith.maximumf %231, %232 : vector<1x128xf32>
    %234 = arith.truncf %233 : vector<1x128xf32> to vector<1x128xbf16>
    %c0_75 = arith.constant 0 : index
    %c0_76 = arith.constant 0 : index
    %235 = vector.load %arg3[%c0_75, %c0_76] : memref<128x512xbf16, #tpu.memory_space<vmem>>, vector<128x512xbf16>
    %cst_77 = arith.constant dense<0.000000e+00> : vector<1x512xf32>
    %236 = tpu.matmul %234, %235, %cst_77 {dimension_numbers = #tpu.dot_dimension_numbers<[1], [0], [0], [1], [0, 0, 1, 1], [], []>} : vector<1x128xbf16>, vector<128x512xbf16>, vector<1x512xf32> -> vector<1x512xf32>
    %237 = arith.truncf %220 : vector<1x128xf32> to vector<1x128xbf16>
    %c0_78 = arith.constant 0 : index
    %c0_79 = arith.constant 0 : index
    %238 = vector.load %arg4[%c0_78, %c0_79] : memref<128x512xbf16, #tpu.memory_space<vmem>>, vector<128x512xbf16>
    %cst_80 = arith.constant dense<0.000000e+00> : vector<1x512xf32>
    %239 = tpu.matmul %237, %238, %cst_80 {dimension_numbers = #tpu.dot_dimension_numbers<[1], [0], [0], [1], [0, 0, 1, 1], [], []>} : vector<1x128xbf16>, vector<128x512xbf16>, vector<1x512xf32> -> vector<1x512xf32>
    %240 = arith.addf %236, %239 : vector<1x512xf32>
    %c0_81 = arith.constant 0 : index
    %c0_82 = arith.constant 0 : index
    %241 = vector.load %arg5[%c0_81, %c0_82] : memref<1x512xf32, #tpu.memory_space<vmem>>, vector<1x512xf32>
    %242 = arith.addf %240, %241 : vector<1x512xf32>
    %243 = vector.extract_strided_slice %242 {offsets = [0, 0], sizes = [1, 128], strides = [1, 1]} : vector<1x512xf32> to vector<1x128xf32>
    %244 = arith.negf %243 : vector<1x128xf32>
    %245 = math.exp %244 : vector<1x128xf32>
    %cst_83 = arith.constant 1.000000e+00 : f32
    %246 = vector.broadcast %cst_83 : f32 to vector<1x128xf32>
    %247 = arith.addf %246, %245 : vector<1x128xf32>
    %248 = arith.divf %246, %247 : vector<1x128xf32>
    %249 = vector.extract_strided_slice %242 {offsets = [0, 128], sizes = [1, 128], strides = [1, 1]} : vector<1x512xf32> to vector<1x128xf32>
    %250 = arith.negf %249 : vector<1x128xf32>
    %251 = math.exp %250 : vector<1x128xf32>
    %cst_84 = arith.constant 1.000000e+00 : f32
    %252 = vector.broadcast %cst_84 : f32 to vector<1x128xf32>
    %253 = arith.addf %252, %251 : vector<1x128xf32>
    %254 = arith.divf %252, %253 : vector<1x128xf32>
    %255 = vector.extract_strided_slice %242 {offsets = [0, 256], sizes = [1, 128], strides = [1, 1]} : vector<1x512xf32> to vector<1x128xf32>
    %256 = vector.extract_strided_slice %242 {offsets = [0, 384], sizes = [1, 128], strides = [1, 1]} : vector<1x512xf32> to vector<1x128xf32>
    %257 = arith.mulf %248, %256 : vector<1x128xf32>
    %258 = arith.addf %255, %257 : vector<1x128xf32>
    %259 = math.tanh %258 : vector<1x128xf32>
    %cst_85 = arith.constant 1.000000e+00 : f32
    %260 = vector.broadcast %cst_85 : f32 to vector<1x128xf32>
    %261 = arith.subf %260, %254 : vector<1x128xf32>
    %262 = arith.mulf %261, %259 : vector<1x128xf32>
    %263 = arith.mulf %254, %220 : vector<1x128xf32>
    %264 = arith.addf %262, %263 : vector<1x128xf32>
    %265 = vector.broadcast %c5_i32 : i32 to vector<8x128xi32>
    %266 = arith.cmpi eq, %3, %265 : vector<8x128xi32>
    %267 = vector.shape_cast %264 : vector<1x128xf32> to vector<1x128xf32>
    %268 = vector.broadcast %267 : vector<1x128xf32> to vector<8x128xf32>
    %269 = arith.select %266, %268, %225 : vector<8x128xi1>, vector<8x128xf32>
    %c6_i32 = arith.constant 6 : i32
    %c8_i32_86 = arith.constant 8 : i32
    %270 = arith.muli %arg0, %c8_i32_86 : i32
    %271 = arith.addi %270, %c6_i32 : i32
    %272 = arith.index_cast %271 : i32 to index
    %273 = memref.load %arg1[%272] : memref<8xi32, #tpu.memory_space<smem>>
    %274 = arith.index_cast %273 : i32 to index
    %c0_87 = arith.constant 0 : index
    %275 = vector.load %arg2[%274, %c0_87] : memref<128x128xf32, #tpu.memory_space<vmem>>, vector<1x128xf32>
    %cst_88 = arith.constant 0.000000e+00 : f32
    %276 = vector.broadcast %cst_88 : f32 to vector<1x128xf32>
    %277 = arith.maximumf %275, %276 : vector<1x128xf32>
    %278 = arith.truncf %277 : vector<1x128xf32> to vector<1x128xbf16>
    %c0_89 = arith.constant 0 : index
    %c0_90 = arith.constant 0 : index
    %279 = vector.load %arg3[%c0_89, %c0_90] : memref<128x512xbf16, #tpu.memory_space<vmem>>, vector<128x512xbf16>
    %cst_91 = arith.constant dense<0.000000e+00> : vector<1x512xf32>
    %280 = tpu.matmul %278, %279, %cst_91 {dimension_numbers = #tpu.dot_dimension_numbers<[1], [0], [0], [1], [0, 0, 1, 1], [], []>} : vector<1x128xbf16>, vector<128x512xbf16>, vector<1x512xf32> -> vector<1x512xf32>
    %281 = arith.truncf %264 : vector<1x128xf32> to vector<1x128xbf16>
    %c0_92 = arith.constant 0 : index
    %c0_93 = arith.constant 0 : index
    %282 = vector.load %arg4[%c0_92, %c0_93] : memref<128x512xbf16, #tpu.memory_space<vmem>>, vector<128x512xbf16>
    %cst_94 = arith.constant dense<0.000000e+00> : vector<1x512xf32>
    %283 = tpu.matmul %281, %282, %cst_94 {dimension_numbers = #tpu.dot_dimension_numbers<[1], [0], [0], [1], [0, 0, 1, 1], [], []>} : vector<1x128xbf16>, vector<128x512xbf16>, vector<1x512xf32> -> vector<1x512xf32>
    %284 = arith.addf %280, %283 : vector<1x512xf32>
    %c0_95 = arith.constant 0 : index
    %c0_96 = arith.constant 0 : index
    %285 = vector.load %arg5[%c0_95, %c0_96] : memref<1x512xf32, #tpu.memory_space<vmem>>, vector<1x512xf32>
    %286 = arith.addf %284, %285 : vector<1x512xf32>
    %287 = vector.extract_strided_slice %286 {offsets = [0, 0], sizes = [1, 128], strides = [1, 1]} : vector<1x512xf32> to vector<1x128xf32>
    %288 = arith.negf %287 : vector<1x128xf32>
    %289 = math.exp %288 : vector<1x128xf32>
    %cst_97 = arith.constant 1.000000e+00 : f32
    %290 = vector.broadcast %cst_97 : f32 to vector<1x128xf32>
    %291 = arith.addf %290, %289 : vector<1x128xf32>
    %292 = arith.divf %290, %291 : vector<1x128xf32>
    %293 = vector.extract_strided_slice %286 {offsets = [0, 128], sizes = [1, 128], strides = [1, 1]} : vector<1x512xf32> to vector<1x128xf32>
    %294 = arith.negf %293 : vector<1x128xf32>
    %295 = math.exp %294 : vector<1x128xf32>
    %cst_98 = arith.constant 1.000000e+00 : f32
    %296 = vector.broadcast %cst_98 : f32 to vector<1x128xf32>
    %297 = arith.addf %296, %295 : vector<1x128xf32>
    %298 = arith.divf %296, %297 : vector<1x128xf32>
    %299 = vector.extract_strided_slice %286 {offsets = [0, 256], sizes = [1, 128], strides = [1, 1]} : vector<1x512xf32> to vector<1x128xf32>
    %300 = vector.extract_strided_slice %286 {offsets = [0, 384], sizes = [1, 128], strides = [1, 1]} : vector<1x512xf32> to vector<1x128xf32>
    %301 = arith.mulf %292, %300 : vector<1x128xf32>
    %302 = arith.addf %299, %301 : vector<1x128xf32>
    %303 = math.tanh %302 : vector<1x128xf32>
    %cst_99 = arith.constant 1.000000e+00 : f32
    %304 = vector.broadcast %cst_99 : f32 to vector<1x128xf32>
    %305 = arith.subf %304, %298 : vector<1x128xf32>
    %306 = arith.mulf %305, %303 : vector<1x128xf32>
    %307 = arith.mulf %298, %264 : vector<1x128xf32>
    %308 = arith.addf %306, %307 : vector<1x128xf32>
    %309 = vector.broadcast %c6_i32 : i32 to vector<8x128xi32>
    %310 = arith.cmpi eq, %3, %309 : vector<8x128xi32>
    %311 = vector.shape_cast %308 : vector<1x128xf32> to vector<1x128xf32>
    %312 = vector.broadcast %311 : vector<1x128xf32> to vector<8x128xf32>
    %313 = arith.select %310, %312, %269 : vector<8x128xi1>, vector<8x128xf32>
    %c7_i32 = arith.constant 7 : i32
    %c8_i32_100 = arith.constant 8 : i32
    %314 = arith.muli %arg0, %c8_i32_100 : i32
    %315 = arith.addi %314, %c7_i32 : i32
    %316 = arith.index_cast %315 : i32 to index
    %317 = memref.load %arg1[%316] : memref<8xi32, #tpu.memory_space<smem>>
    %318 = arith.index_cast %317 : i32 to index
    %c0_101 = arith.constant 0 : index
    %319 = vector.load %arg2[%318, %c0_101] : memref<128x128xf32, #tpu.memory_space<vmem>>, vector<1x128xf32>
    %cst_102 = arith.constant 0.000000e+00 : f32
    %320 = vector.broadcast %cst_102 : f32 to vector<1x128xf32>
    %321 = arith.maximumf %319, %320 : vector<1x128xf32>
    %322 = arith.truncf %321 : vector<1x128xf32> to vector<1x128xbf16>
    %c0_103 = arith.constant 0 : index
    %c0_104 = arith.constant 0 : index
    %323 = vector.load %arg3[%c0_103, %c0_104] : memref<128x512xbf16, #tpu.memory_space<vmem>>, vector<128x512xbf16>
    %cst_105 = arith.constant dense<0.000000e+00> : vector<1x512xf32>
    %324 = tpu.matmul %322, %323, %cst_105 {dimension_numbers = #tpu.dot_dimension_numbers<[1], [0], [0], [1], [0, 0, 1, 1], [], []>} : vector<1x128xbf16>, vector<128x512xbf16>, vector<1x512xf32> -> vector<1x512xf32>
    %325 = arith.truncf %308 : vector<1x128xf32> to vector<1x128xbf16>
    %c0_106 = arith.constant 0 : index
    %c0_107 = arith.constant 0 : index
    %326 = vector.load %arg4[%c0_106, %c0_107] : memref<128x512xbf16, #tpu.memory_space<vmem>>, vector<128x512xbf16>
    %cst_108 = arith.constant dense<0.000000e+00> : vector<1x512xf32>
    %327 = tpu.matmul %325, %326, %cst_108 {dimension_numbers = #tpu.dot_dimension_numbers<[1], [0], [0], [1], [0, 0, 1, 1], [], []>} : vector<1x128xbf16>, vector<128x512xbf16>, vector<1x512xf32> -> vector<1x512xf32>
    %328 = arith.addf %324, %327 : vector<1x512xf32>
    %c0_109 = arith.constant 0 : index
    %c0_110 = arith.constant 0 : index
    %329 = vector.load %arg5[%c0_109, %c0_110] : memref<1x512xf32, #tpu.memory_space<vmem>>, vector<1x512xf32>
    %330 = arith.addf %328, %329 : vector<1x512xf32>
    %331 = vector.extract_strided_slice %330 {offsets = [0, 0], sizes = [1, 128], strides = [1, 1]} : vector<1x512xf32> to vector<1x128xf32>
    %332 = arith.negf %331 : vector<1x128xf32>
    %333 = math.exp %332 : vector<1x128xf32>
    %cst_111 = arith.constant 1.000000e+00 : f32
    %334 = vector.broadcast %cst_111 : f32 to vector<1x128xf32>
    %335 = arith.addf %334, %333 : vector<1x128xf32>
    %336 = arith.divf %334, %335 : vector<1x128xf32>
    %337 = vector.extract_strided_slice %330 {offsets = [0, 128], sizes = [1, 128], strides = [1, 1]} : vector<1x512xf32> to vector<1x128xf32>
    %338 = arith.negf %337 : vector<1x128xf32>
    %339 = math.exp %338 : vector<1x128xf32>
    %cst_112 = arith.constant 1.000000e+00 : f32
    %340 = vector.broadcast %cst_112 : f32 to vector<1x128xf32>
    %341 = arith.addf %340, %339 : vector<1x128xf32>
    %342 = arith.divf %340, %341 : vector<1x128xf32>
    %343 = vector.extract_strided_slice %330 {offsets = [0, 256], sizes = [1, 128], strides = [1, 1]} : vector<1x512xf32> to vector<1x128xf32>
    %344 = vector.extract_strided_slice %330 {offsets = [0, 384], sizes = [1, 128], strides = [1, 1]} : vector<1x512xf32> to vector<1x128xf32>
    %345 = arith.mulf %336, %344 : vector<1x128xf32>
    %346 = arith.addf %343, %345 : vector<1x128xf32>
    %347 = math.tanh %346 : vector<1x128xf32>
    %cst_113 = arith.constant 1.000000e+00 : f32
    %348 = vector.broadcast %cst_113 : f32 to vector<1x128xf32>
    %349 = arith.subf %348, %342 : vector<1x128xf32>
    %350 = arith.mulf %349, %347 : vector<1x128xf32>
    %351 = arith.mulf %342, %308 : vector<1x128xf32>
    %352 = arith.addf %350, %351 : vector<1x128xf32>
    %353 = vector.broadcast %c7_i32 : i32 to vector<8x128xi32>
    %354 = arith.cmpi eq, %3, %353 : vector<8x128xi32>
    %355 = vector.shape_cast %352 : vector<1x128xf32> to vector<1x128xf32>
    %356 = vector.broadcast %355 : vector<1x128xf32> to vector<8x128xf32>
    %357 = arith.select %354, %356, %313 : vector<8x128xi1>, vector<8x128xf32>
    %c8_i32_114 = arith.constant 8 : i32
    %c0_115 = arith.constant 0 : index
    %c0_116 = arith.constant 0 : index
    %358 = vector.load %arg8[%c0_115, %c0_116] : memref<1x128xf32, #tpu.memory_space<vmem>>, vector<1x128xf32>
    tpu.vector_store %arg8[%c0_115, %c0_116], %352 {strides = array<i32>} : memref<1x128xf32, #tpu.memory_space<vmem>>, vector<1x128xf32>,
    %c0_117 = arith.constant 0 : index
    %c0_118 = arith.constant 0 : index
    %359 = vector.load %arg7[%c0_117, %c0_118] : memref<8x128xf32, #tpu.memory_space<vmem>>, vector<8x128xf32>
    tpu.vector_store %arg7[%c0_117, %c0_118], %357 {strides = array<i32>} : memref<8x128xf32, #tpu.memory_space<vmem>>, vector<8x128xf32>,
    return
  }
  func.func @transform_0(%arg0: i32, %arg1: memref<8xi32, #tpu.memory_space<smem>>) -> (i32, i32) {
    %c0_i32 = arith.constant 0 : i32
    %c0_i32_0 = arith.constant 0 : i32
    %c0_i32_1 = arith.constant 0 : i32
    return %c0_i32, %c0_i32_0 : i32, i32
  }
  func.func @transform_1(%arg0: i32, %arg1: memref<8xi32, #tpu.memory_space<smem>>) -> (i32, i32) {
    %c0_i32 = arith.constant 0 : i32
    %c0_i32_0 = arith.constant 0 : i32
    %c0_i32_1 = arith.constant 0 : i32
    return %c0_i32, %c0_i32_0 : i32, i32
  }
  func.func @transform_2(%arg0: i32, %arg1: memref<8xi32, #tpu.memory_space<smem>>) -> (i32, i32) {
    %c0_i32 = arith.constant 0 : i32
    %c0_i32_0 = arith.constant 0 : i32
    %c0_i32_1 = arith.constant 0 : i32
    return %c0_i32, %c0_i32_0 : i32, i32
  }
  func.func @transform_3(%arg0: i32, %arg1: memref<8xi32, #tpu.memory_space<smem>>) -> (i32, i32) {
    %c0_i32 = arith.constant 0 : i32
    %c0_i32_0 = arith.constant 0 : i32
    %c0_i32_1 = arith.constant 0 : i32
    return %c0_i32, %c0_i32_0 : i32, i32
  }
  func.func @transform_4(%arg0: i32, %arg1: memref<8xi32, #tpu.memory_space<smem>>) -> (i32, i32) {
    %c0_i32 = arith.constant 0 : i32
    %c0_i32_0 = arith.constant 0 : i32
    %c0_i32_1 = arith.constant 0 : i32
    return %c0_i32, %c0_i32_0 : i32, i32
  }
  func.func @transform_5(%arg0: i32, %arg1: memref<8xi32, #tpu.memory_space<smem>>) -> (i32, i32) {
    %c0_i32 = arith.constant 0 : i32
    %c0_i32_0 = arith.constant 0 : i32
    return %arg0, %c0_i32 : i32, i32
  }
}

</mosaic_0001>

<llo_original>
// kernel: tpu_custom_call.1
$region0: #{tpu_custom_call.1}
  #allocation0 [shape = 'u32[]', space=smem, size = 0x4, offset = 0x4, fixed_abs, tag = 'smem constant byte address 0x4 - core index']
  #allocation1 [shape = 'u32[144,128]{1,0:T(1,128)}', space=vmem, size = 0x12000, scoped, tag = 'internal scratch']
  #allocation2 [shape = 'f32[1,128]{1,0:T(1,128)}', space=vmem, size = 0x200, scoped, tag = 'scratch operand']
  #allocation3 [shape = 's32[1]{0}', space=sflag, size = 0x4, scoped, tag = 'scoped memory for tpu_custom_call.1']
  #allocation4 [shape = 'u8[512]{0}', space=smem, size = 0x200, scoped, tag = 'prefetched SMEM operand 0']
  %s0 = inlined_call_operand.hbm [shape: s32[8], index: 0, kind: input, shape index: {}]
  %s1 = inlined_call_operand.hbm [shape: f32[128,128], index: 1, kind: input, shape index: {}]
  %s2 = inlined_call_operand.hbm [shape: bf16[128,512], index: 2, kind: input, shape index: {}]
  %s3 = inlined_call_operand.hbm [shape: bf16[128,512], index: 3, kind: input, shape index: {}]
  %s4 = inlined_call_operand.vmem [shape: f32[1,512], index: 4, kind: input, shape index: {}]
  %s5 = inlined_call_operand.vmem [shape: f32[1,128], index: 5, kind: input, shape index: {}]
  %s6 = inlined_call_operand.hbm [shape: f32[8,128], index: 6, kind: output, shape index: {}]
  %s7 = sld [smem:[#allocation0]]
  $region46: #{tpu_custom_call.1} parent=0
    _
  %s9 = ssub.s32 1, %s7
  %s10 = scalar_select 0, %s9, %s7
  %12 = dma.hbm_to_smem %s0, 16, [#allocation4], [#allocation3]
  %13 = dma.done [#allocation3], 16
  %14 = sfence
  $region1: #{tpu_custom_call.1} parent=0
    #allocation5 [shape = 'u8[65536]{0}', space=vmem, size = 0x10000, scoped, tag = 'input window, operand 1, single buffered']
    #allocation6 [shape = 's32[1]{0}', space=sflag, size = 0x4, scoped, tag = 'scoped memory for tpu_custom_call.1']
    #allocation7 [shape = 's32[1]{0}', space=sflag, size = 0x4, scoped, tag = 'scoped memory for tpu_custom_call.1']
    #allocation8 [shape = 'u8[131072]{0}', space=vmem, size = 0x20000, scoped, tag = 'input window, operand 2, single buffered']
    #allocation9 [shape = 's32[1]{0}', space=sflag, size = 0x4, scoped, tag = 'scoped memory for tpu_custom_call.1']
    #allocation10 [shape = 'u8[131072]{0}', space=vmem, size = 0x20000, scoped, tag = 'input window, operand 3, single buffered']
    #allocation11 [shape = 'u8[4096]{0}', space=vmem, size = 0x1000, scoped, tag = 'output window, operand 0, single buffered']
    %15 = vsyncpa [#allocation6], 0
    %16 = vsyncpa [#allocation9], 0
    %17 = vsyncpa [#allocation7], 0
    // Predicated region
    $region2: #{tpu_custom_call.1} parent=1 // pred_check
      _
    $region3: #{tpu_custom_call.1} parent=1 // pred_check_branch
      %19 = sbr.rel (0) target = $region5
    $region4: #{tpu_custom_call.1} parent=1 // pred_region
      %s21 = ssub.s32 2048, 2048
      %22 = vsyncadd [#allocation6], %s21
      %s23 = sshll.u32 [#allocation5], 4
      %s24 = int_to_ptr.vmem [resolvable:$true] %s23
      %29 = dma.hbm_to_vmem [thread:$0]  %s1, 2048, %s24, [#allocation6], 128, 128, 8
    $region5: #{tpu_custom_call.1} parent=1 // pred_fallthru
      _
    // Predicated region
    $region6: #{tpu_custom_call.1} parent=1 // pred_check
      _
    $region7: #{tpu_custom_call.1} parent=1 // pred_check_branch
      %31 = sbr.rel (0) target = $region9
    $region8: #{tpu_custom_call.1} parent=1 // pred_region
      %s33 = ssub.s32 4096, 4096
      %34 = vsyncadd [#allocation9], %s33
      %s35 = sshll.u32 [#allocation8], 4
      %s36 = int_to_ptr.vmem [resolvable:$true] %s35
      %41 = dma.hbm_to_vmem [thread:$0]  %s2, 4096, %s36, [#allocation9], 256, 256, 16
    $region9: #{tpu_custom_call.1} parent=1 // pred_fallthru
      _
    // Predicated region
    $region10: #{tpu_custom_call.1} parent=1 // pred_check
      _
    $region11: #{tpu_custom_call.1} parent=1 // pred_check_branch
      %43 = sbr.rel (0) target = $region13
    $region12: #{tpu_custom_call.1} parent=1 // pred_region
      %s45 = ssub.s32 4096, 4096
      %46 = vsyncadd [#allocation9], %s45
      %s47 = sshll.u32 [#allocation10], 4
      %s48 = int_to_ptr.vmem [resolvable:$true] %s47
      %53 = dma.hbm_to_vmem [thread:$0]  %s3, 4096, %s48, [#allocation9], 256, 256, 16
    $region13: #{tpu_custom_call.1} parent=1 // pred_fallthru
      _
    // Predicated region
    $region14: #{tpu_custom_call.1} parent=1 // pred_check
      _
    $region15: #{tpu_custom_call.1} parent=1 // pred_check_branch
      %55 = sbr.rel (0) target = $region17
    $region16: #{tpu_custom_call.1} parent=1 // pred_region
      _
    $region17: #{tpu_custom_call.1} parent=1 // pred_fallthru
      _
    // Predicated region
    $region18: #{tpu_custom_call.1} parent=1 // pred_check
      _
    $region19: #{tpu_custom_call.1} parent=1 // pred_check_branch
      %57 = sbr.rel (0) target = $region21
    $region20: #{tpu_custom_call.1} parent=1 // pred_region
      _
    $region21: #{tpu_custom_call.1} parent=1 // pred_fallthru
      _
    // Predicated region
    $region22: #{tpu_custom_call.1} parent=1 // pred_check
      _
    $region23: #{tpu_custom_call.1} parent=1 // pred_check_branch
      %59 = sbr.rel (0) target = $region25
    $region24: #{tpu_custom_call.1} parent=1 // pred_region
      %60 = dma.done [#allocation6], 2048
    $region25: #{tpu_custom_call.1} parent=1 // pred_fallthru
      _
    // Predicated region
    $region26: #{tpu_custom_call.1} parent=1 // pred_check
      _
    $region27: #{tpu_custom_call.1} parent=1 // pred_check_branch
      %62 = sbr.rel (0) target = $region29
    $region28: #{tpu_custom_call.1} parent=1 // pred_region
      %63 = dma.done [#allocation9], 4096
    $region29: #{tpu_custom_call.1} parent=1 // pred_fallthru
      _
    // Predicated region
    $region30: #{tpu_custom_call.1} parent=1 // pred_check
      _
    $region31: #{tpu_custom_call.1} parent=1 // pred_check_branch
      %65 = sbr.rel (0) target = $region33
    $region32: #{tpu_custom_call.1} parent=1 // pred_region
      %66 = dma.done [#allocation9], 4096
    $region33: #{tpu_custom_call.1} parent=1 // pred_fallthru
      _
    %p68 = scmp.eq.s32.totalorder 0, 0
    // Predicated region
    $region34: #{tpu_custom_call.1} parent=1 // pred_check
      %p69 = pneg %p68
    $region35: #{tpu_custom_call.1} parent=1 // pred_check_branch
      %71 = sbr.rel (%p69) target = $region37
    $region36: #{tpu_custom_call.1} parent=1 // pred_region
      %v72 = vld [vmem:[%s5] sm:$0x1]
      %73 = vst [vmem:[#allocation2] sm:$0x1] %v72
    $region37: #{tpu_custom_call.1} parent=1 // pred_fallthru
      _
    %v74 = vlaneseq
    %v75 = vshrl.u32 %v74, 7
    %v76 = vld [vmem:[#allocation2] sm:$0x1]
    %s77 = smul.u32 0, 8
    %s78 = sld [smem:[#allocation4 + %s77]]
    %s79 = scalar_lea.vmem [#allocation5], %s78
    %v80 = vld [vmem:[%s79] sm:$0x1]
    %v81 = vmax.f32 %v80, 0.0
    %v82 = vpack.c.bf16 %v81, %v81
    %v83 = vld [vmem:[#allocation8] sm:$0xff]
    %v84 = vld [vmem:[#allocation8 + $0x8] sm:$0xff]
    %v85 = vld [vmem:[#allocation8 + $0x10] sm:$0xff]
    %v86 = vld [vmem:[#allocation8 + $0x18] sm:$0xff]
    %v87 = vld [vmem:[#allocation8 + $0x20] sm:$0xff]
    %v88 = vld [vmem:[#allocation8 + $0x28] sm:$0xff]
    %v89 = vld [vmem:[#allocation8 + $0x30] sm:$0xff]
    %v90 = vld [vmem:[#allocation8 + $0x38] sm:$0xff]
    %v91 = vld [vmem:[#allocation8 + $0x40] sm:$0xff]
    %v92 = vld [vmem:[#allocation8 + $0x48] sm:$0xff]
    %v93 = vld [vmem:[#allocation8 + $0x50] sm:$0xff]
    %v94 = vld [vmem:[#allocation8 + $0x58] sm:$0xff]
    %v95 = vld [vmem:[#allocation8 + $0x60] sm:$0xff]
    %v96 = vld [vmem:[#allocation8 + $0x68] sm:$0xff]
    %v97 = vld [vmem:[#allocation8 + $0x70] sm:$0xff]
    %v98 = vld [vmem:[#allocation8 + $0x78] sm:$0xff]
    %v99 = vld [vmem:[#allocation8 + $0x80] sm:$0xff]
    %v100 = vld [vmem:[#allocation8 + $0x88] sm:$0xff]
    %v101 = vld [vmem:[#allocation8 + $0x90] sm:$0xff]
    %v102 = vld [vmem:[#allocation8 + $0x98] sm:$0xff]
    %v103 = vld [vmem:[#allocation8 + $0xa0] sm:$0xff]
    %v104 = vld [vmem:[#allocation8 + $0xa8] sm:$0xff]
    %v105 = vld [vmem:[#allocation8 + $0xb0] sm:$0xff]
    %v106 = vld [vmem:[#allocation8 + $0xb8] sm:$0xff]
    %v107 = vld [vmem:[#allocation8 + $0xc0] sm:$0xff]
    %v108 = vld [vmem:[#allocation8 + $0xc8] sm:$0xff]
    %v109 = vld [vmem:[#allocation8 + $0xd0] sm:$0xff]
    %v110 = vld [vmem:[#allocation8 + $0xd8] sm:$0xff]
    %v111 = vld [vmem:[#allocation8 + $0xe0] sm:$0xff]
    %v112 = vld [vmem:[#allocation8 + $0xe8] sm:$0xff]
    %v113 = vld [vmem:[#allocation8 + $0xf0] sm:$0xff]
    %v114 = vld [vmem:[#allocation8 + $0xf8] sm:$0xff]
    %v115 = vpack.c.bf16 %v76, %v76
    %v116 = vld [vmem:[#allocation10] sm:$0xff]
    %v117 = vld [vmem:[#allocation10 + $0x8] sm:$0xff]
    %v118 = vld [vmem:[#allocation10 + $0x10] sm:$0xff]
    %v119 = vld [vmem:[#allocation10 + $0x18] sm:$0xff]
    %v120 = vld [vmem:[#allocation10 + $0x20] sm:$0xff]
    %v121 = vld [vmem:[#allocation10 + $0x28] sm:$0xff]
    %v122 = vld [vmem:[#allocation10 + $0x30] sm:$0xff]
    %v123 = vld [vmem:[#allocation10 + $0x38] sm:$0xff]
    %v124 = vld [vmem:[#allocation10 + $0x40] sm:$0xff]
    %v125 = vld [vmem:[#allocation10 + $0x48] sm:$0xff]
    %v126 = vld [vmem:[#allocation10 + $0x50] sm:$0xff]
    %v127 = vld [vmem:[#allocation10 + $0x58] sm:$0xff]
    %v128 = vld [vmem:[#allocation10 + $0x60] sm:$0xff]
    %v129 = vld [vmem:[#allocation10 + $0x68] sm:$0xff]
    %v130 = vld [vmem:[#allocation10 + $0x70] sm:$0xff]
    %v131 = vld [vmem:[#allocation10 + $0x78] sm:$0xff]
    %v132 = vld [vmem:[#allocation10 + $0x80] sm:$0xff]
    %v133 = vld [vmem:[#allocation10 + $0x88] sm:$0xff]
    %v134 = vld [vmem:[#allocation10 + $0x90] sm:$0xff]
    %v135 = vld [vmem:[#allocation10 + $0x98] sm:$0xff]
    %v136 = vld [vmem:[#allocation10 + $0xa0] sm:$0xff]
    %v137 = vld [vmem:[#allocation10 + $0xa8] sm:$0xff]
    %v138 = vld [vmem:[#allocation10 + $0xb0] sm:$0xff]
    %v139 = vld [vmem:[#allocation10 + $0xb8] sm:$0xff]
    %v140 = vld [vmem:[#allocation10 + $0xc0] sm:$0xff]
    %v141 = vld [vmem:[#allocation10 + $0xc8] sm:$0xff]
    %v142 = vld [vmem:[#allocation10 + $0xd0] sm:$0xff]
    %v143 = vld [vmem:[#allocation10 + $0xd8] sm:$0xff]
    %v144 = vld [vmem:[#allocation10 + $0xe0] sm:$0xff]
    %v145 = vld [vmem:[#allocation10 + $0xe8] sm:$0xff]
    %v146 = vld [vmem:[#allocation10 + $0xf0] sm:$0xff]
    %v147 = vld [vmem:[#allocation10 + $0xf8] sm:$0xff]
    %v180 = vunpack.c.l.b16 %v116
    %v181 = vunpack.c.h.b16 %v116
    %v182 = vunpack.c.l.b16 %v117
    %v183 = vunpack.c.h.b16 %v117
    %v184 = vunpack.c.l.b16 %v118
    %v185 = vunpack.c.h.b16 %v118
    %v186 = vunpack.c.l.b16 %v119
    %v187 = vunpack.c.h.b16 %v119
    %v188 = vunpack.c.l.b16 %v120
    %v189 = vunpack.c.h.b16 %v120
    %v190 = vunpack.c.l.b16 %v121
    %v191 = vunpack.c.h.b16 %v121
    %v192 = vunpack.c.l.b16 %v122
    %v193 = vunpack.c.h.b16 %v122
    %v194 = vunpack.c.l.b16 %v123
    %v195 = vunpack.c.h.b16 %v123
    %v196 = vunpack.c.l.b16 %v124
    %v197 = vunpack.c.h.b16 %v124
    %v198 = vunpack.c.l.b16 %v125
    %v199 = vunpack.c.h.b16 %v125
    %v200 = vunpack.c.l.b16 %v126
    %v201 = vunpack.c.h.b16 %v126
    %v202 = vunpack.c.l.b16 %v127
    %v203 = vunpack.c.h.b16 %v127
    %v204 = vunpack.c.l.b16 %v128
    %v205 = vunpack.c.h.b16 %v128
    %v206 = vunpack.c.l.b16 %v129
    %v207 = vunpack.c.h.b16 %v129
    %v208 = vunpack.c.l.b16 %v130
    %v209 = vunpack.c.h.b16 %v130
    %v210 = vunpack.c.l.b16 %v131
    %v211 = vunpack.c.h.b16 %v131
    %v212 = vunpack.c.l.b16 %v132
    %v213 = vunpack.c.h.b16 %v132
    %v214 = vunpack.c.l.b16 %v133
    %v215 = vunpack.c.h.b16 %v133
    %v216 = vunpack.c.l.b16 %v134
    %v217 = vunpack.c.h.b16 %v134
    %v218 = vunpack.c.l.b16 %v135
    %v219 = vunpack.c.h.b16 %v135
    %v220 = vunpack.c.l.b16 %v136
    %v221 = vunpack.c.h.b16 %v136
    %v222 = vunpack.c.l.b16 %v137
    %v223 = vunpack.c.h.b16 %v137
    %v224 = vunpack.c.l.b16 %v138
    %v225 = vunpack.c.h.b16 %v138
    %v226 = vunpack.c.l.b16 %v139
    %v227 = vunpack.c.h.b16 %v139
    %v228 = vunpack.c.l.b16 %v140
    %v229 = vunpack.c.h.b16 %v140
    %v230 = vunpack.c.l.b16 %v141
    %v231 = vunpack.c.h.b16 %v141
    %v232 = vunpack.c.l.b16 %v142
    %v233 = vunpack.c.h.b16 %v142
    %v234 = vunpack.c.l.b16 %v143
    %v235 = vunpack.c.h.b16 %v143
    %v236 = vunpack.c.l.b16 %v144
    %v237 = vunpack.c.h.b16 %v144
    %v238 = vunpack.c.l.b16 %v145
    %v239 = vunpack.c.h.b16 %v145
    %v240 = vunpack.c.l.b16 %v146
    %v241 = vunpack.c.h.b16 %v146
    %v242 = vunpack.c.l.b16 %v147
    %v243 = vunpack.c.h.b16 %v147
    %v244 = vpack.c.b16 %v184, %v180
    %v245 = vpack.c.b16 %v185, %v181
    %v246 = vpack.c.b16 %v186, %v182
    %v247 = vpack.c.b16 %v187, %v183
    %v248 = vpack.c.b16 %v192, %v188
    %v249 = vpack.c.b16 %v193, %v189
    %v250 = vpack.c.b16 %v194, %v190
    %v251 = vpack.c.b16 %v195, %v191
    %v252 = vpack.c.b16 %v200, %v196
    %v253 = vpack.c.b16 %v201, %v197
    %v254 = vpack.c.b16 %v202, %v198
    %v255 = vpack.c.b16 %v203, %v199
    %v256 = vpack.c.b16 %v208, %v204
    %v257 = vpack.c.b16 %v209, %v205
    %v258 = vpack.c.b16 %v210, %v206
    %v259 = vpack.c.b16 %v211, %v207
    %v260 = vpack.c.b16 %v216, %v212
    %v261 = vpack.c.b16 %v217, %v213
    %v262 = vpack.c.b16 %v218, %v214
    %v263 = vpack.c.b16 %v219, %v215
    %v264 = vpack.c.b16 %v224, %v220
    %v265 = vpack.c.b16 %v225, %v221
    %v266 = vpack.c.b16 %v226, %v222
    %v267 = vpack.c.b16 %v227, %v223
    %v268 = vpack.c.b16 %v232, %v228
    %v269 = vpack.c.b16 %v233, %v229
    %v270 = vpack.c.b16 %v234, %v230
    %v271 = vpack.c.b16 %v235, %v231
    %v272 = vpack.c.b16 %v240, %v236
    %v273 = vpack.c.b16 %v241, %v237
    %v274 = vpack.c.b16 %v242, %v238
    %v275 = vpack.c.b16 %v243, %v239
    %308 = vmatprep.subr.bf16.mxu0 %v245
    %309 = vmatpush1.bf16.msra.mxu0 %v244
    %310 = vmatprep.subr.bf16.mxu0 %v249
    %311 = vmatpush1.bf16.msra.mxu0 %v248
    %312 = vmatprep.subr.bf16.mxu0 %v253
    %313 = vmatpush1.bf16.msra.mxu0 %v252
    %314 = vmatprep.subr.bf16.mxu0 %v257
    %315 = vmatpush1.bf16.msra.mxu0 %v256
    %316 = vmatprep.subr.bf16.mxu0 %v261
    %317 = vmatpush1.bf16.msra.mxu0 %v260
    %318 = vmatprep.subr.bf16.mxu0 %v265
    %319 = vmatpush1.bf16.msra.mxu0 %v264
    %320 = vmatprep.subr.bf16.mxu0 %v269
    %321 = vmatpush1.bf16.msra.mxu0 %v268
    %322 = vmatprep.subr.bf16.mxu0 %v273
    %323 = vmatpush1.bf16.msra.mxu0 %v272
    %324 = vmatprep.subr.bf16.mxu0 0
    %325 = vmatpush1.bf16.msra.mxu0 0
    %326 = vmatprep.subr.bf16.mxu0 0
    %327 = vmatpush1.bf16.msra.mxu0 0
    %328 = vmatprep.subr.bf16.mxu0 0
    %329 = vmatpush1.bf16.msra.mxu0 0
    %330 = vmatprep.subr.bf16.mxu0 0
    %331 = vmatpush1.bf16.msra.mxu0 0
    %332 = vmatprep.subr.bf16.mxu0 0
    %333 = vmatpush1.bf16.msra.mxu0 0
    %334 = vmatprep.subr.bf16.mxu0 0
    %335 = vmatpush1.bf16.msra.mxu0 0
    %336 = vmatprep.subr.bf16.mxu0 0
    %337 = vmatpush1.bf16.msra.mxu0 0
    %338 = vmatprep.subr.bf16.mxu0 0
    %339 = vmatpush1.bf16.msra.mxu0 0
    %340 = vmatprep.mubr.bf16.mxu0 0
    %341 = vmatmul.mubr.bf16.gmra.mrb[0].mxu0 %v115
    %v342 = vpop.f32.mrb[0].mxu0
    %v343 = vadd.f32 0.0, %v342
    %v344 = vpop.f32.mrb[0].mxu0
    %v345 = vadd.f32 0.0, %v344
    %v346 = vpop.f32.mrb[0].mxu0
    %v347 = vpop.f32.mrb[0].mxu0
    %348 = vdwg.mxu0
    %349 = vmatprep.subr.bf16.mxu0 %v247
    %350 = vmatpush1.bf16.msra.mxu0 %v246
    %351 = vmatprep.subr.bf16.mxu0 %v251
    %352 = vmatpush1.bf16.msra.mxu0 %v250
    %353 = vmatprep.subr.bf16.mxu0 %v255
    %354 = vmatpush1.bf16.msra.mxu0 %v254
    %355 = vmatprep.subr.bf16.mxu0 %v259
    %356 = vmatpush1.bf16.msra.mxu0 %v258
    %357 = vmatprep.subr.bf16.mxu0 %v263
    %358 = vmatpush1.bf16.msra.mxu0 %v262
    %359 = vmatprep.subr.bf16.mxu0 %v267
    %360 = vmatpush1.bf16.msra.mxu0 %v266
    %361 = vmatprep.subr.bf16.mxu0 %v271
    %362 = vmatpush1.bf16.msra.mxu0 %v270
    %363 = vmatprep.subr.bf16.mxu0 %v275
    %364 = vmatpush1.bf16.msra.mxu0 %v274
    %365 = vmatprep.subr.bf16.mxu0 0
    %366 = vmatpush1.bf16.msra.mxu0 0
    %367 = vmatprep.subr.bf16.mxu0 0
    %368 = vmatpush1.bf16.msra.mxu0 0
    %369 = vmatprep.subr.bf16.mxu0 0
    %370 = vmatpush1.bf16.msra.mxu0 0
    %371 = vmatprep.subr.bf16.mxu0 0
    %372 = vmatpush1.bf16.msra.mxu0 0
    %373 = vmatprep.subr.bf16.mxu0 0
    %374 = vmatpush1.bf16.msra.mxu0 0
    %375 = vmatprep.subr.bf16.mxu0 0
    %376 = vmatpush1.bf16.msra.mxu0 0
    %377 = vmatprep.subr.bf16.mxu0 0
    %378 = vmatpush1.bf16.msra.mxu0 0
    %379 = vmatprep.subr.bf16.mxu0 0
    %380 = vmatpush1.bf16.msra.mxu0 0
    %381 = vmatprep.mubr.bf16.mxu0 0
    %382 = vmatmul.mubr.bf16.gmra.mrb[0].mxu0 %v115
    %v383 = vpop.f32.mrb[0].mxu0
    %v384 = vadd.f32 0.0, %v383
    %v385 = vpop.f32.mrb[0].mxu0
    %v386 = vadd.f32 0.0, %v385
    %v387 = vpop.f32.mrb[0].mxu0
    %v388 = vpop.f32.mrb[0].mxu0
    %389 = vdwg.mxu0
    %v422 = vunpack.c.l.b16 %v83
    %v423 = vunpack.c.h.b16 %v83
    %v424 = vunpack.c.l.b16 %v84
    %v425 = vunpack.c.h.b16 %v84
    %v426 = vunpack.c.l.b16 %v85
    %v427 = vunpack.c.h.b16 %v85
    %v428 = vunpack.c.l.b16 %v86
    %v429 = vunpack.c.h.b16 %v86
    %v430 = vunpack.c.l.b16 %v87
    %v431 = vunpack.c.h.b16 %v87
    %v432 = vunpack.c.l.b16 %v88
    %v433 = vunpack.c.h.b16 %v88
    %v434 = vunpack.c.l.b16 %v89
    %v435 = vunpack.c.h.b16 %v89
    %v436 = vunpack.c.l.b16 %v90
    %v437 = vunpack.c.h.b16 %v90
    %v438 = vunpack.c.l.b16 %v91
    %v439 = vunpack.c.h.b16 %v91
    %v440 = vunpack.c.l.b16 %v92
    %v441 = vunpack.c.h.b16 %v92
    %v442 = vunpack.c.l.b16 %v93
    %v443 = vunpack.c.h.b16 %v93
    %v444 = vunpack.c.l.b16 %v94
    %v445 = vunpack.c.h.b16 %v94
    %v446 = vunpack.c.l.b16 %v95
    %v447 = vunpack.c.h.b16 %v95
    %v448 = vunpack.c.l.b16 %v96
    %v449 = vunpack.c.h.b16 %v96
    %v450 = vunpack.c.l.b16 %v97
    %v451 = vunpack.c.h.b16 %v97
    %v452 = vunpack.c.l.b16 %v98
    %v453 = vunpack.c.h.b16 %v98
    %v454 = vunpack.c.l.b16 %v99
    %v455 = vunpack.c.h.b16 %v99
    %v456 = vunpack.c.l.b16 %v100
    %v457 = vunpack.c.h.b16 %v100
    %v458 = vunpack.c.l.b16 %v101
    %v459 = vunpack.c.h.b16 %v101
    %v460 = vunpack.c.l.b16 %v102
    %v461 = vunpack.c.h.b16 %v102
    %v462 = vunpack.c.l.b16 %v103
    %v463 = vunpack.c.h.b16 %v103
    %v464 = vunpack.c.l.b16 %v104
    %v465 = vunpack.c.h.b16 %v104
    %v466 = vunpack.c.l.b16 %v105
    %v467 = vunpack.c.h.b16 %v105
    %v468 = vunpack.c.l.b16 %v106
    %v469 = vunpack.c.h.b16 %v106
    %v470 = vunpack.c.l.b16 %v107
    %v471 = vunpack.c.h.b16 %v107
    %v472 = vunpack.c.l.b16 %v108
    %v473 = vunpack.c.h.b16 %v108
    %v474 = vunpack.c.l.b16 %v109
    %v475 = vunpack.c.h.b16 %v109
    %v476 = vunpack.c.l.b16 %v110
    %v477 = vunpack.c.h.b16 %v110
    %v478 = vunpack.c.l.b16 %v111
    %v479 = vunpack.c.h.b16 %v111
    %v480 = vunpack.c.l.b16 %v112
    %v481 = vunpack.c.h.b16 %v112
    %v482 = vunpack.c.l.b16 %v113
    %v483 = vunpack.c.h.b16 %v113
    %v484 = vunpack.c.l.b16 %v114
    %v485 = vunpack.c.h.b16 %v114
    %v486 = vpack.c.b16 %v426, %v422
    %v487 = vpack.c.b16 %v427, %v423
    %v488 = vpack.c.b16 %v428, %v424
    %v489 = vpack.c.b16 %v429, %v425
    %v490 = vpack.c.b16 %v434, %v430
    %v491 = vpack.c.b16 %v435, %v431
    %v492 = vpack.c.b16 %v436, %v432
    %v493 = vpack.c.b16 %v437, %v433
    %v494 = vpack.c.b16 %v442, %v438
    %v495 = vpack.c.b16 %v443, %v439
    %v496 = vpack.c.b16 %v444, %v440
    %v497 = vpack.c.b16 %v445, %v441
    %v498 = vpack.c.b16 %v450, %v446
    %v499 = vpack.c.b16 %v451, %v447
    %v500 = vpack.c.b16 %v452, %v448
    %v501 = vpack.c.b16 %v453, %v449
    %v502 = vpack.c.b16 %v458, %v454
    %v503 = vpack.c.b16 %v459, %v455
    %v504 = vpack.c.b16 %v460, %v456
    %v505 = vpack.c.b16 %v461, %v457
    %v506 = vpack.c.b16 %v466, %v462
    %v507 = vpack.c.b16 %v467, %v463
    %v508 = vpack.c.b16 %v468, %v464
    %v509 = vpack.c.b16 %v469, %v465
    %v510 = vpack.c.b16 %v474, %v470
    %v511 = vpack.c.b16 %v475, %v471
    %v512 = vpack.c.b16 %v476, %v472
    %v513 = vpack.c.b16 %v477, %v473
    %v514 = vpack.c.b16 %v482, %v478
    %v515 = vpack.c.b16 %v483, %v479
    %v516 = vpack.c.b16 %v484, %v480
    %v517 = vpack.c.b16 %v485, %v481
    %550 = vmatprep.subr.bf16.mxu0 %v487
    %551 = vmatpush1.bf16.msra.mxu0 %v486
    %552 = vmatprep.subr.bf16.mxu0 %v491
    %553 = vmatpush1.bf16.msra.mxu0 %v490
    %554 = vmatprep.subr.bf16.mxu0 %v495
    %555 = vmatpush1.bf16.msra.mxu0 %v494
    %556 = vmatprep.subr.bf16.mxu0 %v499
    %557 = vmatpush1.bf16.msra.mxu0 %v498
    %558 = vmatprep.subr.bf16.mxu0 %v503
    %559 = vmatpush1.bf16.msra.mxu0 %v502
    %560 = vmatprep.subr.bf16.mxu0 %v507
    %561 = vmatpush1.bf16.msra.mxu0 %v506
    %562 = vmatprep.subr.bf16.mxu0 %v511
    %563 = vmatpush1.bf16.msra.mxu0 %v510
    %564 = vmatprep.subr.bf16.mxu0 %v515
    %565 = vmatpush1.bf16.msra.mxu0 %v514
    %566 = vmatprep.subr.bf16.mxu0 0
    %567 = vmatpush1.bf16.msra.mxu0 0
    %568 = vmatprep.subr.bf16.mxu0 0
    %569 = vmatpush1.bf16.msra.mxu0 0
    %570 = vmatprep.subr.bf16.mxu0 0
    %571 = vmatpush1.bf16.msra.mxu0 0
    %572 = vmatprep.subr.bf16.mxu0 0
    %573 = vmatpush1.bf16.msra.mxu0 0
    %574 = vmatprep.subr.bf16.mxu0 0
    %575 = vmatpush1.bf16.msra.mxu0 0
    %576 = vmatprep.subr.bf16.mxu0 0
    %577 = vmatpush1.bf16.msra.mxu0 0
    %578 = vmatprep.subr.bf16.mxu0 0
    %579 = vmatpush1.bf16.msra.mxu0 0
    %580 = vmatprep.subr.bf16.mxu0 0
    %581 = vmatpush1.bf16.msra.mxu0 0
    %582 = vmatprep.mubr.bf16.mxu0 0
    %583 = vmatmul.mubr.bf16.gmra.mrb[0].mxu0 %v82
    %v584 = vpop.f32.mrb[0].mxu0
    %v585 = vadd.f32 %v343, %v584
    %v586 = vpop.f32.mrb[0].mxu0
    %v587 = vadd.f32 %v345, %v586
    %v588 = vpop.f32.mrb[0].mxu0
    %v589 = vpop.f32.mrb[0].mxu0
    %590 = vdwg.mxu0
    %591 = vmatprep.subr.bf16.mxu0 %v489
    %592 = vmatpush1.bf16.msra.mxu0 %v488
    %593 = vmatprep.subr.bf16.mxu0 %v493
    %594 = vmatpush1.bf16.msra.mxu0 %v492
    %595 = vmatprep.subr.bf16.mxu0 %v497
    %596 = vmatpush1.bf16.msra.mxu0 %v496
    %597 = vmatprep.subr.bf16.mxu0 %v501
    %598 = vmatpush1.bf16.msra.mxu0 %v500
    %599 = vmatprep.subr.bf16.mxu0 %v505
    %600 = vmatpush1.bf16.msra.mxu0 %v504
    %601 = vmatprep.subr.bf16.mxu0 %v509
    %602 = vmatpush1.bf16.msra.mxu0 %v508
    %603 = vmatprep.subr.bf16.mxu0 %v513
    %604 = vmatpush1.bf16.msra.mxu0 %v512
    %605 = vmatprep.subr.bf16.mxu0 %v517
    %606 = vmatpush1.bf16.msra.mxu0 %v516
    %607 = vmatprep.subr.bf16.mxu0 0
    %608 = vmatpush1.bf16.msra.mxu0 0
    %609 = vmatprep.subr.bf16.mxu0 0
    %610 = vmatpush1.bf16.msra.mxu0 0
    %611 = vmatprep.subr.bf16.mxu0 0
    %612 = vmatpush1.bf16.msra.mxu0 0
    %613 = vmatprep.subr.bf16.mxu0 0
    %614 = vmatpush1.bf16.msra.mxu0 0
    %615 = vmatprep.subr.bf16.mxu0 0
    %616 = vmatpush1.bf16.msra.mxu0 0
    %617 = vmatprep.subr.bf16.mxu0 0
    %618 = vmatpush1.bf16.msra.mxu0 0
    %619 = vmatprep.subr.bf16.mxu0 0
    %620 = vmatpush1.bf16.msra.mxu0 0
    %621 = vmatprep.subr.bf16.mxu0 0
    %622 = vmatpush1.bf16.msra.mxu0 0
    %623 = vmatprep.mubr.bf16.mxu0 0
    %624 = vmatmul.mubr.bf16.gmra.mrb[0].mxu0 %v82
    %v625 = vpop.f32.mrb[0].mxu0
    %v626 = vadd.f32 %v384, %v625
    %v627 = vpop.f32.mrb[0].mxu0
    %v628 = vadd.f32 %v386, %v627
    %v629 = vpop.f32.mrb[0].mxu0
    %v630 = vpop.f32.mrb[0].mxu0
    %631 = vdwg.mxu0
    %v632 = vld [vmem:[%s4] sm:$0xf]
    %v634 = vlaneseq
    %v635 = vshrl.u32 %v634, 7
    %v636 = vsub.s32 0, %v635
    %v637 = vrot.slane %v632, %v636
    %v638 = vlaneseq
    %v639 = vshrl.u32 %v638, 7
    %v640 = vsub.s32 1, %v639
    %v641 = vrot.slane %v632, %v640
    %v642 = vlaneseq
    %v643 = vshrl.u32 %v642, 7
    %v644 = vsub.s32 2, %v643
    %v645 = vrot.slane %v632, %v644
    %v646 = vlaneseq
    %v647 = vshrl.u32 %v646, 7
    %v648 = vsub.s32 3, %v647
    %v649 = vrot.slane %v632, %v648
    %v654 = vadd.f32 %v585, %v637
    %v655 = vadd.f32 %v587, %v641
    %v656 = vadd.f32 %v626, %v645
    %v657 = vadd.f32 %v628, %v649
    %v658 = vxor.u32 %v654, 2147483648
    %v659 = vmul.f32 %v658, 1.442695
    %v660 = vpow.pop %v659
    %v661 = vadd.f32 %v660, 1.0
    %v662 = vrcp.pop %v661
    %v663 = vmul.f32 1.0, %v662
    %v664 = vxor.u32 %v655, 2147483648
    %v665 = vmul.f32 %v664, 1.442695
    %v666 = vpow.pop %v665
    %v667 = vadd.f32 %v666, 1.0
    %v668 = vrcp.pop %v667
    %v669 = vmul.f32 1.0, %v668
    %v670 = vmul.f32 %v663, %v657
    %v671 = vadd.f32 %v656, %v670
    %v672 = vtanh.pop %v671
    %v673 = vsub.f32 1.0, %v669
    %v674 = vmul.f32 %v673, %v672
    %v675 = vmul.f32 %v669, %v76
    %v676 = vadd.f32 %v674, %v675
    %vm677 = vcmp.eq.s32.totalorder %v75, 0
    %v678 = vlaneseq
    %v679 = vshrl.u32 %v678, 7
    %v680 = vsub.s32 0, %v679
    %v681 = vrot.slane %v676, %v680
    %v682 = vsel %vm677, %v681, 0.0
    %s683 = sadd.s32 %s77, 1
    %s684 = sld [smem:[#allocation4 + %s683]]
    %s685 = scalar_lea.vmem [#allocation5], %s684
    %v686 = vld [vmem:[%s685] sm:$0x1]
    %v687 = vmax.f32 %v686, 0.0
    %v688 = vpack.c.bf16 %v687, %v687
    %v689 = vpack.c.bf16 %v676, %v676
    %690 = vmatprep.subr.bf16.mxu0 %v245
    %691 = vmatpush1.bf16.msra.mxu0 %v244
    %692 = vmatprep.subr.bf16.mxu0 %v249
    %693 = vmatpush1.bf16.msra.mxu0 %v248
    %694 = vmatprep.subr.bf16.mxu0 %v253
    %695 = vmatpush1.bf16.msra.mxu0 %v252
    %696 = vmatprep.subr.bf16.mxu0 %v257
    %697 = vmatpush1.bf16.msra.mxu0 %v256
    %698 = vmatprep.subr.bf16.mxu0 %v261
    %699 = vmatpush1.bf16.msra.mxu0 %v260
    %700 = vmatprep.subr.bf16.mxu0 %v265
    %701 = vmatpush1.bf16.msra.mxu0 %v264
    %702 = vmatprep.subr.bf16.mxu0 %v269
    %703 = vmatpush1.bf16.msra.mxu0 %v268
    %704 = vmatprep.subr.bf16.mxu0 %v273
    %705 = vmatpush1.bf16.msra.mxu0 %v272
    %706 = vmatprep.subr.bf16.mxu0 0
    %707 = vmatpush1.bf16.msra.mxu0 0
    %708 = vmatprep.subr.bf16.mxu0 0
    %709 = vmatpush1.bf16.msra.mxu0 0
    %710 = vmatprep.subr.bf16.mxu0 0
    %711 = vmatpush1.bf16.msra.mxu0 0
    %712 = vmatprep.subr.bf16.mxu0 0
    %713 = vmatpush1.bf16.msra.mxu0 0
    %714 = vmatprep.subr.bf16.mxu0 0
    %715 = vmatpush1.bf16.msra.mxu0 0
    %716 = vmatprep.subr.bf16.mxu0 0
    %717 = vmatpush1.bf16.msra.mxu0 0
    %718 = vmatprep.subr.bf16.mxu0 0
    %719 = vmatpush1.bf16.msra.mxu0 0
    %720 = vmatprep.subr.bf16.mxu0 0
    %721 = vmatpush1.bf16.msra.mxu0 0
    %722 = vmatprep.mubr.bf16.mxu0 0
    %723 = vmatmul.mubr.bf16.gmra.mrb[0].mxu0 %v689
    %v724 = vpop.f32.mrb[0].mxu0
    %v725 = vadd.f32 0.0, %v724
    %v726 = vpop.f32.mrb[0].mxu0
    %v727 = vadd.f32 0.0, %v726
    %v728 = vpop.f32.mrb[0].mxu0
    %v729 = vpop.f32.mrb[0].mxu0
    %730 = vdwg.mxu0
    %731 = vmatprep.subr.bf16.mxu0 %v247
    %732 = vmatpush1.bf16.msra.mxu0 %v246
    %733 = vmatprep.subr.bf16.mxu0 %v251
    %734 = vmatpush1.bf16.msra.mxu0 %v250
    %735 = vmatprep.subr.bf16.mxu0 %v255
    %736 = vmatpush1.bf16.msra.mxu0 %v254
    %737 = vmatprep.subr.bf16.mxu0 %v259
    %738 = vmatpush1.bf16.msra.mxu0 %v258
    %739 = vmatprep.subr.bf16.mxu0 %v263
    %740 = vmatpush1.bf16.msra.mxu0 %v262
    %741 = vmatprep.subr.bf16.mxu0 %v267
    %742 = vmatpush1.bf16.msra.mxu0 %v266
    %743 = vmatprep.subr.bf16.mxu0 %v271
    %744 = vmatpush1.bf16.msra.mxu0 %v270
    %745 = vmatprep.subr.bf16.mxu0 %v275
    %746 = vmatpush1.bf16.msra.mxu0 %v274
    %747 = vmatprep.subr.bf16.mxu0 0
    %748 = vmatpush1.bf16.msra.mxu0 0
    %749 = vmatprep.subr.bf16.mxu0 0
    %750 = vmatpush1.bf16.msra.mxu0 0
    %751 = vmatprep.subr.bf16.mxu0 0
    %752 = vmatpush1.bf16.msra.mxu0 0
    %753 = vmatprep.subr.bf16.mxu0 0
    %754 = vmatpush1.bf16.msra.mxu0 0
    %755 = vmatprep.subr.bf16.mxu0 0
    %756 = vmatpush1.bf16.msra.mxu0 0
    %757 = vmatprep.subr.bf16.mxu0 0
    %758 = vmatpush1.bf16.msra.mxu0 0
    %759 = vmatprep.subr.bf16.mxu0 0
    %760 = vmatpush1.bf16.msra.mxu0 0
    %761 = vmatprep.subr.bf16.mxu0 0
    %762 = vmatpush1.bf16.msra.mxu0 0
    %763 = vmatprep.mubr.bf16.mxu0 0
    %764 = vmatmul.mubr.bf16.gmra.mrb[0].mxu0 %v689
    %v765 = vpop.f32.mrb[0].mxu0
    %v766 = vadd.f32 0.0, %v765
    %v767 = vpop.f32.mrb[0].mxu0
    %v768 = vadd.f32 0.0, %v767
    %v769 = vpop.f32.mrb[0].mxu0
    %v770 = vpop.f32.mrb[0].mxu0
    %771 = vdwg.mxu0
    %772 = vmatprep.subr.bf16.mxu0 %v487
    %773 = vmatpush1.bf16.msra.mxu0 %v486
    %774 = vmatprep.subr.bf16.mxu0 %v491
    %775 = vmatpush1.bf16.msra.mxu0 %v490
    %776 = vmatprep.subr.bf16.mxu0 %v495
    %777 = vmatpush1.bf16.msra.mxu0 %v494
    %778 = vmatprep.subr.bf16.mxu0 %v499
    %779 = vmatpush1.bf16.msra.mxu0 %v498
    %780 = vmatprep.subr.bf16.mxu0 %v503
    %781 = vmatpush1.bf16.msra.mxu0 %v502
    %782 = vmatprep.subr.bf16.mxu0 %v507
    %783 = vmatpush1.bf16.msra.mxu0 %v506
    %784 = vmatprep.subr.bf16.mxu0 %v511
    %785 = vmatpush1.bf16.msra.mxu0 %v510
    %786 = vmatprep.subr.bf16.mxu0 %v515
    %787 = vmatpush1.bf16.msra.mxu0 %v514
    %788 = vmatprep.subr.bf16.mxu0 0
    %789 = vmatpush1.bf16.msra.mxu0 0
    %790 = vmatprep.subr.bf16.mxu0 0
    %791 = vmatpush1.bf16.msra.mxu0 0
    %792 = vmatprep.subr.bf16.mxu0 0
    %793 = vmatpush1.bf16.msra.mxu0 0
    %794 = vmatprep.subr.bf16.mxu0 0
    %795 = vmatpush1.bf16.msra.mxu0 0
    %796 = vmatprep.subr.bf16.mxu0 0
    %797 = vmatpush1.bf16.msra.mxu0 0
    %798 = vmatprep.subr.bf16.mxu0 0
    %799 = vmatpush1.bf16.msra.mxu0 0
    %800 = vmatprep.subr.bf16.mxu0 0
    %801 = vmatpush1.bf16.msra.mxu0 0
    %802 = vmatprep.subr.bf16.mxu0 0
    %803 = vmatpush1.bf16.msra.mxu0 0
    %804 = vmatprep.mubr.bf16.mxu0 0
    %805 = vmatmul.mubr.bf16.gmra.mrb[0].mxu0 %v688
    %v806 = vpop.f32.mrb[0].mxu0
    %v807 = vadd.f32 %v725, %v806
    %v808 = vpop.f32.mrb[0].mxu0
    %v809 = vadd.f32 %v727, %v808
    %v810 = vpop.f32.mrb[0].mxu0
    %v811 = vpop.f32.mrb[0].mxu0
    %812 = vdwg.mxu0
    %813 = vmatprep.subr.bf16.mxu0 %v489
    %814 = vmatpush1.bf16.msra.mxu0 %v488
    %815 = vmatprep.subr.bf16.mxu0 %v493
    %816 = vmatpush1.bf16.msra.mxu0 %v492
    %817 = vmatprep.subr.bf16.mxu0 %v497
    %818 = vmatpush1.bf16.msra.mxu0 %v496
    %819 = vmatprep.subr.bf16.mxu0 %v501
    %820 = vmatpush1.bf16.msra.mxu0 %v500
    %821 = vmatprep.subr.bf16.mxu0 %v505
    %822 = vmatpush1.bf16.msra.mxu0 %v504
    %823 = vmatprep.subr.bf16.mxu0 %v509
    %824 = vmatpush1.bf16.msra.mxu0 %v508
    %825 = vmatprep.subr.bf16.mxu0 %v513
    %826 = vmatpush1.bf16.msra.mxu0 %v512
    %827 = vmatprep.subr.bf16.mxu0 %v517
    %828 = vmatpush1.bf16.msra.mxu0 %v516
    %829 = vmatprep.subr.bf16.mxu0 0
    %830 = vmatpush1.bf16.msra.mxu0 0
    %831 = vmatprep.subr.bf16.mxu0 0
    %832 = vmatpush1.bf16.msra.mxu0 0
    %833 = vmatprep.subr.bf16.mxu0 0
    %834 = vmatpush1.bf16.msra.mxu0 0
    %835 = vmatprep.subr.bf16.mxu0 0
    %836 = vmatpush1.bf16.msra.mxu0 0
    %837 = vmatprep.subr.bf16.mxu0 0
    %838 = vmatpush1.bf16.msra.mxu0 0
    %839 = vmatprep.subr.bf16.mxu0 0
    %840 = vmatpush1.bf16.msra.mxu0 0
    %841 = vmatprep.subr.bf16.mxu0 0
    %842 = vmatpush1.bf16.msra.mxu0 0
    %843 = vmatprep.subr.bf16.mxu0 0
    %844 = vmatpush1.bf16.msra.mxu0 0
    %845 = vmatprep.mubr.bf16.mxu0 0
    %846 = vmatmul.mubr.bf16.gmra.mrb[0].mxu0 %v688
    %v847 = vpop.f32.mrb[0].mxu0
    %v848 = vadd.f32 %v766, %v847
    %v849 = vpop.f32.mrb[0].mxu0
    %v850 = vadd.f32 %v768, %v849
    %v851 = vpop.f32.mrb[0].mxu0
    %v852 = vpop.f32.mrb[0].mxu0
    %853 = vdwg.mxu0
    %v854 = vadd.f32 %v807, %v637
    %v855 = vadd.f32 %v809, %v641
    %v856 = vadd.f32 %v848, %v645
    %v857 = vadd.f32 %v850, %v649
    %v858 = vxor.u32 %v854, 2147483648
    %v859 = vmul.f32 %v858, 1.442695
    %v860 = vpow.pop %v859
    %v861 = vadd.f32 %v860, 1.0
    %v862 = vrcp.pop %v861
    %v863 = vmul.f32 1.0, %v862
    %v864 = vxor.u32 %v855, 2147483648
    %v865 = vmul.f32 %v864, 1.442695
    %v866 = vpow.pop %v865
    %v867 = vadd.f32 %v866, 1.0
    %v868 = vrcp.pop %v867
    %v869 = vmul.f32 1.0, %v868
    %v870 = vmul.f32 %v863, %v857
    %v871 = vadd.f32 %v856, %v870
    %v872 = vtanh.pop %v871
    %v873 = vsub.f32 1.0, %v869
    %v874 = vmul.f32 %v873, %v872
    %v875 = vmul.f32 %v869, %v676
    %v876 = vadd.f32 %v874, %v875
    %vm877 = vcmp.eq.s32.totalorder %v75, 1
    %v878 = vlaneseq
    %v879 = vshrl.u32 %v878, 7
    %v880 = vsub.s32 0, %v879
    %v881 = vrot.slane %v876, %v880
    %v882 = vsel %vm877, %v881, %v682
    %s883 = sadd.s32 %s77, 2
    %s884 = sld [smem:[#allocation4 + %s883]]
    %s885 = scalar_lea.vmem [#allocation5], %s884
    %v886 = vld [vmem:[%s885] sm:$0x1]
    %v887 = vmax.f32 %v886, 0.0
    %v888 = vpack.c.bf16 %v887, %v887
    %v889 = vpack.c.bf16 %v876, %v876
    %890 = vmatprep.subr.bf16.mxu0 %v245
    %891 = vmatpush1.bf16.msra.mxu0 %v244
    %892 = vmatprep.subr.bf16.mxu0 %v249
    %893 = vmatpush1.bf16.msra.mxu0 %v248
    %894 = vmatprep.subr.bf16.mxu0 %v253
    %895 = vmatpush1.bf16.msra.mxu0 %v252
    %896 = vmatprep.subr.bf16.mxu0 %v257
    %897 = vmatpush1.bf16.msra.mxu0 %v256
    %898 = vmatprep.subr.bf16.mxu0 %v261
    %899 = vmatpush1.bf16.msra.mxu0 %v260
    %900 = vmatprep.subr.bf16.mxu0 %v265
    %901 = vmatpush1.bf16.msra.mxu0 %v264
    %902 = vmatprep.subr.bf16.mxu0 %v269
    %903 = vmatpush1.bf16.msra.mxu0 %v268
    %904 = vmatprep.subr.bf16.mxu0 %v273
    %905 = vmatpush1.bf16.msra.mxu0 %v272
    %906 = vmatprep.subr.bf16.mxu0 0
    %907 = vmatpush1.bf16.msra.mxu0 0
    %908 = vmatprep.subr.bf16.mxu0 0
    %909 = vmatpush1.bf16.msra.mxu0 0
    %910 = vmatprep.subr.bf16.mxu0 0
    %911 = vmatpush1.bf16.msra.mxu0 0
    %912 = vmatprep.subr.bf16.mxu0 0
    %913 = vmatpush1.bf16.msra.mxu0 0
    %914 = vmatprep.subr.bf16.mxu0 0
    %915 = vmatpush1.bf16.msra.mxu0 0
    %916 = vmatprep.subr.bf16.mxu0 0
    %917 = vmatpush1.bf16.msra.mxu0 0
    %918 = vmatprep.subr.bf16.mxu0 0
    %919 = vmatpush1.bf16.msra.mxu0 0
    %920 = vmatprep.subr.bf16.mxu0 0
    %921 = vmatpush1.bf16.msra.mxu0 0
    %922 = vmatprep.mubr.bf16.mxu0 0
    %923 = vmatmul.mubr.bf16.gmra.mrb[0].mxu0 %v889
    %v924 = vpop.f32.mrb[0].mxu0
    %v925 = vadd.f32 0.0, %v924
    %v926 = vpop.f32.mrb[0].mxu0
    %v927 = vadd.f32 0.0, %v926
    %v928 = vpop.f32.mrb[0].mxu0
    %v929 = vpop.f32.mrb[0].mxu0
    %930 = vdwg.mxu0
    %931 = vmatprep.subr.bf16.mxu0 %v247
    %932 = vmatpush1.bf16.msra.mxu0 %v246
    %933 = vmatprep.subr.bf16.mxu0 %v251
    %934 = vmatpush1.bf16.msra.mxu0 %v250
    %935 = vmatprep.subr.bf16.mxu0 %v255
    %936 = vmatpush1.bf16.msra.mxu0 %v254
    %937 = vmatprep.subr.bf16.mxu0 %v259
    %938 = vmatpush1.bf16.msra.mxu0 %v258
    %939 = vmatprep.subr.bf16.mxu0 %v263
    %940 = vmatpush1.bf16.msra.mxu0 %v262
    %941 = vmatprep.subr.bf16.mxu0 %v267
    %942 = vmatpush1.bf16.msra.mxu0 %v266
    %943 = vmatprep.subr.bf16.mxu0 %v271
    %944 = vmatpush1.bf16.msra.mxu0 %v270
    %945 = vmatprep.subr.bf16.mxu0 %v275
    %946 = vmatpush1.bf16.msra.mxu0 %v274
    %947 = vmatprep.subr.bf16.mxu0 0
    %948 = vmatpush1.bf16.msra.mxu0 0
    %949 = vmatprep.subr.bf16.mxu0 0
    %950 = vmatpush1.bf16.msra.mxu0 0
    %951 = vmatprep.subr.bf16.mxu0 0
    %952 = vmatpush1.bf16.msra.mxu0 0
    %953 = vmatprep.subr.bf16.mxu0 0
    %954 = vmatpush1.bf16.msra.mxu0 0
    %955 = vmatprep.subr.bf16.mxu0 0
    %956 = vmatpush1.bf16.msra.mxu0 0
    %957 = vmatprep.subr.bf16.mxu0 0
    %958 = vmatpush1.bf16.msra.mxu0 0
    %959 = vmatprep.subr.bf16.mxu0 0
    %960 = vmatpush1.bf16.msra.mxu0 0
    %961 = vmatprep.subr.bf16.mxu0 0
    %962 = vmatpush1.bf16.msra.mxu0 0
    %963 = vmatprep.mubr.bf16.mxu0 0
    %964 = vmatmul.mubr.bf16.gmra.mrb[0].mxu0 %v889
    %v965 = vpop.f32.mrb[0].mxu0
    %v966 = vadd.f32 0.0, %v965
    %v967 = vpop.f32.mrb[0].mxu0
    %v968 = vadd.f32 0.0, %v967
    %v969 = vpop.f32.mrb[0].mxu0
    %v970 = vpop.f32.mrb[0].mxu0
    %971 = vdwg.mxu0
    %972 = vmatprep.subr.bf16.mxu0 %v487
    %973 = vmatpush1.bf16.msra.mxu0 %v486
    %974 = vmatprep.subr.bf16.mxu0 %v491
    %975 = vmatpush1.bf16.msra.mxu0 %v490
    %976 = vmatprep.subr.bf16.mxu0 %v495
    %977 = vmatpush1.bf16.msra.mxu0 %v494
    %978 = vmatprep.subr.bf16.mxu0 %v499
    %979 = vmatpush1.bf16.msra.mxu0 %v498
    %980 = vmatprep.subr.bf16.mxu0 %v503
    %981 = vmatpush1.bf16.msra.mxu0 %v502
    %982 = vmatprep.subr.bf16.mxu0 %v507
    %983 = vmatpush1.bf16.msra.mxu0 %v506
    %984 = vmatprep.subr.bf16.mxu0 %v511
    %985 = vmatpush1.bf16.msra.mxu0 %v510
    %986 = vmatprep.subr.bf16.mxu0 %v515
    %987 = vmatpush1.bf16.msra.mxu0 %v514
    %988 = vmatprep.subr.bf16.mxu0 0
    %989 = vmatpush1.bf16.msra.mxu0 0
    %990 = vmatprep.subr.bf16.mxu0 0
    %991 = vmatpush1.bf16.msra.mxu0 0
    %992 = vmatprep.subr.bf16.mxu0 0
    %993 = vmatpush1.bf16.msra.mxu0 0
    %994 = vmatprep.subr.bf16.mxu0 0
    %995 = vmatpush1.bf16.msra.mxu0 0
    %996 = vmatprep.subr.bf16.mxu0 0
    %997 = vmatpush1.bf16.msra.mxu0 0
    %998 = vmatprep.subr.bf16.mxu0 0
    %999 = vmatpush1.bf16.msra.mxu0 0
    %1000 = vmatprep.subr.bf16.mxu0 0
    %1001 = vmatpush1.bf16.msra.mxu0 0
    %1002 = vmatprep.subr.bf16.mxu0 0
    %1003 = vmatpush1.bf16.msra.mxu0 0
    %1004 = vmatprep.mubr.bf16.mxu0 0
    %1005 = vmatmul.mubr.bf16.gmra.mrb[0].mxu0 %v888
    %v1006 = vpop.f32.mrb[0].mxu0
    %v1007 = vadd.f32 %v925, %v1006
    %v1008 = vpop.f32.mrb[0].mxu0
    %v1009 = vadd.f32 %v927, %v1008
    %v1010 = vpop.f32.mrb[0].mxu0
    %v1011 = vpop.f32.mrb[0].mxu0
    %1012 = vdwg.mxu0
    %1013 = vmatprep.subr.bf16.mxu0 %v489
    %1014 = vmatpush1.bf16.msra.mxu0 %v488
    %1015 = vmatprep.subr.bf16.mxu0 %v493
    %1016 = vmatpush1.bf16.msra.mxu0 %v492
    %1017 = vmatprep.subr.bf16.mxu0 %v497
    %1018 = vmatpush1.bf16.msra.mxu0 %v496
    %1019 = vmatprep.subr.bf16.mxu0 %v501
    %1020 = vmatpush1.bf16.msra.mxu0 %v500
    %1021 = vmatprep.subr.bf16.mxu0 %v505
    %1022 = vmatpush1.bf16.msra.mxu0 %v504
    %1023 = vmatprep.subr.bf16.mxu0 %v509
    %1024 = vmatpush1.bf16.msra.mxu0 %v508
    %1025 = vmatprep.subr.bf16.mxu0 %v513
    %1026 = vmatpush1.bf16.msra.mxu0 %v512
    %1027 = vmatprep.subr.bf16.mxu0 %v517
    %1028 = vmatpush1.bf16.msra.mxu0 %v516
    %1029 = vmatprep.subr.bf16.mxu0 0
    %1030 = vmatpush1.bf16.msra.mxu0 0
    %1031 = vmatprep.subr.bf16.mxu0 0
    %1032 = vmatpush1.bf16.msra.mxu0 0
    %1033 = vmatprep.subr.bf16.mxu0 0
    %1034 = vmatpush1.bf16.msra.mxu0 0
    %1035 = vmatprep.subr.bf16.mxu0 0
    %1036 = vmatpush1.bf16.msra.mxu0 0
    %1037 = vmatprep.subr.bf16.mxu0 0
    %1038 = vmatpush1.bf16.msra.mxu0 0
    %1039 = vmatprep.subr.bf16.mxu0 0
    %1040 = vmatpush1.bf16.msra.mxu0 0
    %1041 = vmatprep.subr.bf16.mxu0 0
    %1042 = vmatpush1.bf16.msra.mxu0 0
    %1043 = vmatprep.subr.bf16.mxu0 0
    %1044 = vmatpush1.bf16.msra.mxu0 0
    %1045 = vmatprep.mubr.bf16.mxu0 0
    %1046 = vmatmul.mubr.bf16.gmra.mrb[0].mxu0 %v888
    %v1047 = vpop.f32.mrb[0].mxu0
    %v1048 = vadd.f32 %v966, %v1047
    %v1049 = vpop.f32.mrb[0].mxu0
    %v1050 = vadd.f32 %v968, %v1049
    %v1051 = vpop.f32.mrb[0].mxu0
    %v1052 = vpop.f32.mrb[0].mxu0
    %1053 = vdwg.mxu0
    %v1054 = vadd.f32 %v1007, %v637
    %v1055 = vadd.f32 %v1009, %v641
    %v1056 = vadd.f32 %v1048, %v645
    %v1057 = vadd.f32 %v1050, %v649
    %v1058 = vxor.u32 %v1054, 2147483648
    %v1059 = vmul.f32 %v1058, 1.442695
    %v1060 = vpow.pop %v1059
    %v1061 = vadd.f32 %v1060, 1.0
    %v1062 = vrcp.pop %v1061
    %v1063 = vmul.f32 1.0, %v1062
    %v1064 = vxor.u32 %v1055, 2147483648
    %v1065 = vmul.f32 %v1064, 1.442695
    %v1066 = vpow.pop %v1065
    %v1067 = vadd.f32 %v1066, 1.0
    %v1068 = vrcp.pop %v1067
    %v1069 = vmul.f32 1.0, %v1068
    %v1070 = vmul.f32 %v1063, %v1057
    %v1071 = vadd.f32 %v1056, %v1070
    %v1072 = vtanh.pop %v1071
    %v1073 = vsub.f32 1.0, %v1069
    %v1074 = vmul.f32 %v1073, %v1072
    %v1075 = vmul.f32 %v1069, %v876
    %v1076 = vadd.f32 %v1074, %v1075
    %vm1077 = vcmp.eq.s32.totalorder %v75, 2
    %v1078 = vlaneseq
    %v1079 = vshrl.u32 %v1078, 7
    %v1080 = vsub.s32 0, %v1079
    %v1081 = vrot.slane %v1076, %v1080
    %v1082 = vsel %vm1077, %v1081, %v882
    %s1083 = sadd.s32 %s77, 3
    %s1084 = sld [smem:[#allocation4 + %s1083]]
    %s1085 = scalar_lea.vmem [#allocation5], %s1084
    %v1086 = vld [vmem:[%s1085] sm:$0x1]
    %v1087 = vmax.f32 %v1086, 0.0
    %v1088 = vpack.c.bf16 %v1087, %v1087
    %v1089 = vpack.c.bf16 %v1076, %v1076
    %1090 = vmatprep.subr.bf16.mxu0 %v245
    %1091 = vmatpush1.bf16.msra.mxu0 %v244
    %1092 = vmatprep.subr.bf16.mxu0 %v249
    %1093 = vmatpush1.bf16.msra.mxu0 %v248
    %1094 = vmatprep.subr.bf16.mxu0 %v253
    %1095 = vmatpush1.bf16.msra.mxu0 %v252
    %1096 = vmatprep.subr.bf16.mxu0 %v257
    %1097 = vmatpush1.bf16.msra.mxu0 %v256
    %1098 = vmatprep.subr.bf16.mxu0 %v261
    %1099 = vmatpush1.bf16.msra.mxu0 %v260
    %1100 = vmatprep.subr.bf16.mxu0 %v265
    %1101 = vmatpush1.bf16.msra.mxu0 %v264
    %1102 = vmatprep.subr.bf16.mxu0 %v269
    %1103 = vmatpush1.bf16.msra.mxu0 %v268
    %1104 = vmatprep.subr.bf16.mxu0 %v273
    %1105 = vmatpush1.bf16.msra.mxu0 %v272
    %1106 = vmatprep.subr.bf16.mxu0 0
    %1107 = vmatpush1.bf16.msra.mxu0 0
    %1108 = vmatprep.subr.bf16.mxu0 0
    %1109 = vmatpush1.bf16.msra.mxu0 0
    %1110 = vmatprep.subr.bf16.mxu0 0
    %1111 = vmatpush1.bf16.msra.mxu0 0
    %1112 = vmatprep.subr.bf16.mxu0 0
    %1113 = vmatpush1.bf16.msra.mxu0 0
    %1114 = vmatprep.subr.bf16.mxu0 0
    %1115 = vmatpush1.bf16.msra.mxu0 0
    %1116 = vmatprep.subr.bf16.mxu0 0
    %1117 = vmatpush1.bf16.msra.mxu0 0
    %1118 = vmatprep.subr.bf16.mxu0 0
    %1119 = vmatpush1.bf16.msra.mxu0 0
    %1120 = vmatprep.subr.bf16.mxu0 0
    %1121 = vmatpush1.bf16.msra.mxu0 0
    %1122 = vmatprep.mubr.bf16.mxu0 0
    %1123 = vmatmul.mubr.bf16.gmra.mrb[0].mxu0 %v1089
    %v1124 = vpop.f32.mrb[0].mxu0
    %v1125 = vadd.f32 0.0, %v1124
    %v1126 = vpop.f32.mrb[0].mxu0
    %v1127 = vadd.f32 0.0, %v1126
    %v1128 = vpop.f32.mrb[0].mxu0
    %v1129 = vpop.f32.mrb[0].mxu0
    %1130 = vdwg.mxu0
    %1131 = vmatprep.subr.bf16.mxu0 %v247
    %1132 = vmatpush1.bf16.msra.mxu0 %v246
    %1133 = vmatprep.subr.bf16.mxu0 %v251
    %1134 = vmatpush1.bf16.msra.mxu0 %v250
    %1135 = vmatprep.subr.bf16.mxu0 %v255
    %1136 = vmatpush1.bf16.msra.mxu0 %v254
    %1137 = vmatprep.subr.bf16.mxu0 %v259
    %1138 = vmatpush1.bf16.msra.mxu0 %v258
    %1139 = vmatprep.subr.bf16.mxu0 %v263
    %1140 = vmatpush1.bf16.msra.mxu0 %v262
    %1141 = vmatprep.subr.bf16.mxu0 %v267
    %1142 = vmatpush1.bf16.msra.mxu0 %v266
    %1143 = vmatprep.subr.bf16.mxu0 %v271
    %1144 = vmatpush1.bf16.msra.mxu0 %v270
    %1145 = vmatprep.subr.bf16.mxu0 %v275
    %1146 = vmatpush1.bf16.msra.mxu0 %v274
    %1147 = vmatprep.subr.bf16.mxu0 0
    %1148 = vmatpush1.bf16.msra.mxu0 0
    %1149 = vmatprep.subr.bf16.mxu0 0
    %1150 = vmatpush1.bf16.msra.mxu0 0
    %1151 = vmatprep.subr.bf16.mxu0 0
    %1152 = vmatpush1.bf16.msra.mxu0 0
    %1153 = vmatprep.subr.bf16.mxu0 0
    %1154 = vmatpush1.bf16.msra.mxu0 0
    %1155 = vmatprep.subr.bf16.mxu0 0
    %1156 = vmatpush1.bf16.msra.mxu0 0
    %1157 = vmatprep.subr.bf16.mxu0 0
    %1158 = vmatpush1.bf16.msra.mxu0 0
    %1159 = vmatprep.subr.bf16.mxu0 0
    %1160 = vmatpush1.bf16.msra.mxu0 0
    %1161 = vmatprep.subr.bf16.mxu0 0
    %1162 = vmatpush1.bf16.msra.mxu0 0
    %1163 = vmatprep.mubr.bf16.mxu0 0
    %1164 = vmatmul.mubr.bf16.gmra.mrb[0].mxu0 %v1089
    %v1165 = vpop.f32.mrb[0].mxu0
    %v1166 = vadd.f32 0.0, %v1165
    %v1167 = vpop.f32.mrb[0].mxu0
    %v1168 = vadd.f32 0.0, %v1167
    %v1169 = vpop.f32.mrb[0].mxu0
    %v1170 = vpop.f32.mrb[0].mxu0
    %1171 = vdwg.mxu0
    %1172 = vmatprep.subr.bf16.mxu0 %v487
    %1173 = vmatpush1.bf16.msra.mxu0 %v486
    %1174 = vmatprep.subr.bf16.mxu0 %v491
    %1175 = vmatpush1.bf16.msra.mxu0 %v490
    %1176 = vmatprep.subr.bf16.mxu0 %v495
    %1177 = vmatpush1.bf16.msra.mxu0 %v494
    %1178 = vmatprep.subr.bf16.mxu0 %v499
    %1179 = vmatpush1.bf16.msra.mxu0 %v498
    %1180 = vmatprep.subr.bf16.mxu0 %v503
    %1181 = vmatpush1.bf16.msra.mxu0 %v502
    %1182 = vmatprep.subr.bf16.mxu0 %v507
    %1183 = vmatpush1.bf16.msra.mxu0 %v506
    %1184 = vmatprep.subr.bf16.mxu0 %v511
    %1185 = vmatpush1.bf16.msra.mxu0 %v510
    %1186 = vmatprep.subr.bf16.mxu0 %v515
    %1187 = vmatpush1.bf16.msra.mxu0 %v514
    %1188 = vmatprep.subr.bf16.mxu0 0
    %1189 = vmatpush1.bf16.msra.mxu0 0
    %1190 = vmatprep.subr.bf16.mxu0 0
    %1191 = vmatpush1.bf16.msra.mxu0 0
    %1192 = vmatprep.subr.bf16.mxu0 0
    %1193 = vmatpush1.bf16.msra.mxu0 0
    %1194 = vmatprep.subr.bf16.mxu0 0
    %1195 = vmatpush1.bf16.msra.mxu0 0
    %1196 = vmatprep.subr.bf16.mxu0 0
    %1197 = vmatpush1.bf16.msra.mxu0 0
    %1198 = vmatprep.subr.bf16.mxu0 0
    %1199 = vmatpush1.bf16.msra.mxu0 0
    %1200 = vmatprep.subr.bf16.mxu0 0
    %1201 = vmatpush1.bf16.msra.mxu0 0
    %1202 = vmatprep.subr.bf16.mxu0 0
    %1203 = vmatpush1.bf16.msra.mxu0 0
    %1204 = vmatprep.mubr.bf16.mxu0 0
    %1205 = vmatmul.mubr.bf16.gmra.mrb[0].mxu0 %v1088
    %v1206 = vpop.f32.mrb[0].mxu0
    %v1207 = vadd.f32 %v1125, %v1206
    %v1208 = vpop.f32.mrb[0].mxu0
    %v1209 = vadd.f32 %v1127, %v1208
    %v1210 = vpop.f32.mrb[0].mxu0
    %v1211 = vpop.f32.mrb[0].mxu0
    %1212 = vdwg.mxu0
    %1213 = vmatprep.subr.bf16.mxu0 %v489
    %1214 = vmatpush1.bf16.msra.mxu0 %v488
    %1215 = vmatprep.subr.bf16.mxu0 %v493
    %1216 = vmatpush1.bf16.msra.mxu0 %v492
    %1217 = vmatprep.subr.bf16.mxu0 %v497
    %1218 = vmatpush1.bf16.msra.mxu0 %v496
    %1219 = vmatprep.subr.bf16.mxu0 %v501
    %1220 = vmatpush1.bf16.msra.mxu0 %v500
    %1221 = vmatprep.subr.bf16.mxu0 %v505
    %1222 = vmatpush1.bf16.msra.mxu0 %v504
    %1223 = vmatprep.subr.bf16.mxu0 %v509
    %1224 = vmatpush1.bf16.msra.mxu0 %v508
    %1225 = vmatprep.subr.bf16.mxu0 %v513
    %1226 = vmatpush1.bf16.msra.mxu0 %v512
    %1227 = vmatprep.subr.bf16.mxu0 %v517
    %1228 = vmatpush1.bf16.msra.mxu0 %v516
    %1229 = vmatprep.subr.bf16.mxu0 0
    %1230 = vmatpush1.bf16.msra.mxu0 0
    %1231 = vmatprep.subr.bf16.mxu0 0
    %1232 = vmatpush1.bf16.msra.mxu0 0
    %1233 = vmatprep.subr.bf16.mxu0 0
    %1234 = vmatpush1.bf16.msra.mxu0 0
    %1235 = vmatprep.subr.bf16.mxu0 0
    %1236 = vmatpush1.bf16.msra.mxu0 0
    %1237 = vmatprep.subr.bf16.mxu0 0
    %1238 = vmatpush1.bf16.msra.mxu0 0
    %1239 = vmatprep.subr.bf16.mxu0 0
    %1240 = vmatpush1.bf16.msra.mxu0 0
    %1241 = vmatprep.subr.bf16.mxu0 0
    %1242 = vmatpush1.bf16.msra.mxu0 0
    %1243 = vmatprep.subr.bf16.mxu0 0
    %1244 = vmatpush1.bf16.msra.mxu0 0
    %1245 = vmatprep.mubr.bf16.mxu0 0
    %1246 = vmatmul.mubr.bf16.gmra.mrb[0].mxu0 %v1088
    %v1247 = vpop.f32.mrb[0].mxu0
    %v1248 = vadd.f32 %v1166, %v1247
    %v1249 = vpop.f32.mrb[0].mxu0
    %v1250 = vadd.f32 %v1168, %v1249
    %v1251 = vpop.f32.mrb[0].mxu0
    %v1252 = vpop.f32.mrb[0].mxu0
    %1253 = vdwg.mxu0
    %v1254 = vadd.f32 %v1207, %v637
    %v1255 = vadd.f32 %v1209, %v641
    %v1256 = vadd.f32 %v1248, %v645
    %v1257 = vadd.f32 %v1250, %v649
    %v1258 = vxor.u32 %v1254, 2147483648
    %v1259 = vmul.f32 %v1258, 1.442695
    %v1260 = vpow.pop %v1259
    %v1261 = vadd.f32 %v1260, 1.0
    %v1262 = vrcp.pop %v1261
    %v1263 = vmul.f32 1.0, %v1262
    %v1264 = vxor.u32 %v1255, 2147483648
    %v1265 = vmul.f32 %v1264, 1.442695
    %v1266 = vpow.pop %v1265
    %v1267 = vadd.f32 %v1266, 1.0
    %v1268 = vrcp.pop %v1267
    %v1269 = vmul.f32 1.0, %v1268
    %v1270 = vmul.f32 %v1263, %v1257
    %v1271 = vadd.f32 %v1256, %v1270
    %v1272 = vtanh.pop %v1271
    %v1273 = vsub.f32 1.0, %v1269
    %v1274 = vmul.f32 %v1273, %v1272
    %v1275 = vmul.f32 %v1269, %v1076
    %v1276 = vadd.f32 %v1274, %v1275
    %vm1277 = vcmp.eq.s32.totalorder %v75, 3
    %v1278 = vlaneseq
    %v1279 = vshrl.u32 %v1278, 7
    %v1280 = vsub.s32 0, %v1279
    %v1281 = vrot.slane %v1276, %v1280
    %v1282 = vsel %vm1277, %v1281, %v1082
    %s1283 = sadd.s32 %s77, 4
    %s1284 = sld [smem:[#allocation4 + %s1283]]
    %s1285 = scalar_lea.vmem [#allocation5], %s1284
    %v1286 = vld [vmem:[%s1285] sm:$0x1]
    %v1287 = vmax.f32 %v1286, 0.0
    %v1288 = vpack.c.bf16 %v1287, %v1287
    %v1289 = vpack.c.bf16 %v1276, %v1276
    %1290 = vmatprep.subr.bf16.mxu0 %v245
    %1291 = vmatpush1.bf16.msra.mxu0 %v244
    %1292 = vmatprep.subr.bf16.mxu0 %v249
    %1293 = vmatpush1.bf16.msra.mxu0 %v248
    %1294 = vmatprep.subr.bf16.mxu0 %v253
    %1295 = vmatpush1.bf16.msra.mxu0 %v252
    %1296 = vmatprep.subr.bf16.mxu0 %v257
    %1297 = vmatpush1.bf16.msra.mxu0 %v256
    %1298 = vmatprep.subr.bf16.mxu0 %v261
    %1299 = vmatpush1.bf16.msra.mxu0 %v260
    %1300 = vmatprep.subr.bf16.mxu0 %v265
    %1301 = vmatpush1.bf16.msra.mxu0 %v264
    %1302 = vmatprep.subr.bf16.mxu0 %v269
    %1303 = vmatpush1.bf16.msra.mxu0 %v268
    %1304 = vmatprep.subr.bf16.mxu0 %v273
    %1305 = vmatpush1.bf16.msra.mxu0 %v272
    %1306 = vmatprep.subr.bf16.mxu0 0
    %1307 = vmatpush1.bf16.msra.mxu0 0
    %1308 = vmatprep.subr.bf16.mxu0 0
    %1309 = vmatpush1.bf16.msra.mxu0 0
    %1310 = vmatprep.subr.bf16.mxu0 0
    %1311 = vmatpush1.bf16.msra.mxu0 0
    %1312 = vmatprep.subr.bf16.mxu0 0
    %1313 = vmatpush1.bf16.msra.mxu0 0
    %1314 = vmatprep.subr.bf16.mxu0 0
    %1315 = vmatpush1.bf16.msra.mxu0 0
    %1316 = vmatprep.subr.bf16.mxu0 0
    %1317 = vmatpush1.bf16.msra.mxu0 0
    %1318 = vmatprep.subr.bf16.mxu0 0
    %1319 = vmatpush1.bf16.msra.mxu0 0
    %1320 = vmatprep.subr.bf16.mxu0 0
    %1321 = vmatpush1.bf16.msra.mxu0 0
    %1322 = vmatprep.mubr.bf16.mxu0 0
    %1323 = vmatmul.mubr.bf16.gmra.mrb[0].mxu0 %v1289
    %v1324 = vpop.f32.mrb[0].mxu0
    %v1325 = vadd.f32 0.0, %v1324
    %v1326 = vpop.f32.mrb[0].mxu0
    %v1327 = vadd.f32 0.0, %v1326
    %v1328 = vpop.f32.mrb[0].mxu0
    %v1329 = vpop.f32.mrb[0].mxu0
    %1330 = vdwg.mxu0
    %1331 = vmatprep.subr.bf16.mxu0 %v247
    %1332 = vmatpush1.bf16.msra.mxu0 %v246
    %1333 = vmatprep.subr.bf16.mxu0 %v251
    %1334 = vmatpush1.bf16.msra.mxu0 %v250
    %1335 = vmatprep.subr.bf16.mxu0 %v255
    %1336 = vmatpush1.bf16.msra.mxu0 %v254
    %1337 = vmatprep.subr.bf16.mxu0 %v259
    %1338 = vmatpush1.bf16.msra.mxu0 %v258
    %1339 = vmatprep.subr.bf16.mxu0 %v263
    %1340 = vmatpush1.bf16.msra.mxu0 %v262
    %1341 = vmatprep.subr.bf16.mxu0 %v267
    %1342 = vmatpush1.bf16.msra.mxu0 %v266
    %1343 = vmatprep.subr.bf16.mxu0 %v271
    %1344 = vmatpush1.bf16.msra.mxu0 %v270
    %1345 = vmatprep.subr.bf16.mxu0 %v275
    %1346 = vmatpush1.bf16.msra.mxu0 %v274
    %1347 = vmatprep.subr.bf16.mxu0 0
    %1348 = vmatpush1.bf16.msra.mxu0 0
    %1349 = vmatprep.subr.bf16.mxu0 0
    %1350 = vmatpush1.bf16.msra.mxu0 0
    %1351 = vmatprep.subr.bf16.mxu0 0
    %1352 = vmatpush1.bf16.msra.mxu0 0
    %1353 = vmatprep.subr.bf16.mxu0 0
    %1354 = vmatpush1.bf16.msra.mxu0 0
    %1355 = vmatprep.subr.bf16.mxu0 0
    %1356 = vmatpush1.bf16.msra.mxu0 0
    %1357 = vmatprep.subr.bf16.mxu0 0
    %1358 = vmatpush1.bf16.msra.mxu0 0
    %1359 = vmatprep.subr.bf16.mxu0 0
    %1360 = vmatpush1.bf16.msra.mxu0 0
    %1361 = vmatprep.subr.bf16.mxu0 0
    %1362 = vmatpush1.bf16.msra.mxu0 0
    %1363 = vmatprep.mubr.bf16.mxu0 0
    %1364 = vmatmul.mubr.bf16.gmra.mrb[0].mxu0 %v1289
    %v1365 = vpop.f32.mrb[0].mxu0
    %v1366 = vadd.f32 0.0, %v1365
    %v1367 = vpop.f32.mrb[0].mxu0
    %v1368 = vadd.f32 0.0, %v1367
    %v1369 = vpop.f32.mrb[0].mxu0
    %v1370 = vpop.f32.mrb[0].mxu0
    %1371 = vdwg.mxu0
    %1372 = vmatprep.subr.bf16.mxu0 %v487
    %1373 = vmatpush1.bf16.msra.mxu0 %v486
    %1374 = vmatprep.subr.bf16.mxu0 %v491
    %1375 = vmatpush1.bf16.msra.mxu0 %v490
    %1376 = vmatprep.subr.bf16.mxu0 %v495
    %1377 = vmatpush1.bf16.msra.mxu0 %v494
    %1378 = vmatprep.subr.bf16.mxu0 %v499
    %1379 = vmatpush1.bf16.msra.mxu0 %v498
    %1380 = vmatprep.subr.bf16.mxu0 %v503
    %1381 = vmatpush1.bf16.msra.mxu0 %v502
    %1382 = vmatprep.subr.bf16.mxu0 %v507
    %1383 = vmatpush1.bf16.msra.mxu0 %v506
    %1384 = vmatprep.subr.bf16.mxu0 %v511
    %1385 = vmatpush1.bf16.msra.mxu0 %v510
    %1386 = vmatprep.subr.bf16.mxu0 %v515
    %1387 = vmatpush1.bf16.msra.mxu0 %v514
    %1388 = vmatprep.subr.bf16.mxu0 0
    %1389 = vmatpush1.bf16.msra.mxu0 0
    %1390 = vmatprep.subr.bf16.mxu0 0
    %1391 = vmatpush1.bf16.msra.mxu0 0
    %1392 = vmatprep.subr.bf16.mxu0 0
    %1393 = vmatpush1.bf16.msra.mxu0 0
    %1394 = vmatprep.subr.bf16.mxu0 0
    %1395 = vmatpush1.bf16.msra.mxu0 0
    %1396 = vmatprep.subr.bf16.mxu0 0
    %1397 = vmatpush1.bf16.msra.mxu0 0
    %1398 = vmatprep.subr.bf16.mxu0 0
    %1399 = vmatpush1.bf16.msra.mxu0 0
    %1400 = vmatprep.subr.bf16.mxu0 0
    %1401 = vmatpush1.bf16.msra.mxu0 0
    %1402 = vmatprep.subr.bf16.mxu0 0
    %1403 = vmatpush1.bf16.msra.mxu0 0
    %1404 = vmatprep.mubr.bf16.mxu0 0
    %1405 = vmatmul.mubr.bf16.gmra.mrb[0].mxu0 %v1288
    %v1406 = vpop.f32.mrb[0].mxu0
    %v1407 = vadd.f32 %v1325, %v1406
    %v1408 = vpop.f32.mrb[0].mxu0
    %v1409 = vadd.f32 %v1327, %v1408
    %v1410 = vpop.f32.mrb[0].mxu0
    %v1411 = vpop.f32.mrb[0].mxu0
    %1412 = vdwg.mxu0
    %1413 = vmatprep.subr.bf16.mxu0 %v489
    %1414 = vmatpush1.bf16.msra.mxu0 %v488
    %1415 = vmatprep.subr.bf16.mxu0 %v493
    %1416 = vmatpush1.bf16.msra.mxu0 %v492
    %1417 = vmatprep.subr.bf16.mxu0 %v497
    %1418 = vmatpush1.bf16.msra.mxu0 %v496
    %1419 = vmatprep.subr.bf16.mxu0 %v501
    %1420 = vmatpush1.bf16.msra.mxu0 %v500
    %1421 = vmatprep.subr.bf16.mxu0 %v505
    %1422 = vmatpush1.bf16.msra.mxu0 %v504
    %1423 = vmatprep.subr.bf16.mxu0 %v509
    %1424 = vmatpush1.bf16.msra.mxu0 %v508
    %1425 = vmatprep.subr.bf16.mxu0 %v513
    %1426 = vmatpush1.bf16.msra.mxu0 %v512
    %1427 = vmatprep.subr.bf16.mxu0 %v517
    %1428 = vmatpush1.bf16.msra.mxu0 %v516
    %1429 = vmatprep.subr.bf16.mxu0 0
    %1430 = vmatpush1.bf16.msra.mxu0 0
    %1431 = vmatprep.subr.bf16.mxu0 0
    %1432 = vmatpush1.bf16.msra.mxu0 0
    %1433 = vmatprep.subr.bf16.mxu0 0
    %1434 = vmatpush1.bf16.msra.mxu0 0
    %1435 = vmatprep.subr.bf16.mxu0 0
    %1436 = vmatpush1.bf16.msra.mxu0 0
    %1437 = vmatprep.subr.bf16.mxu0 0
    %1438 = vmatpush1.bf16.msra.mxu0 0
    %1439 = vmatprep.subr.bf16.mxu0 0
    %1440 = vmatpush1.bf16.msra.mxu0 0
    %1441 = vmatprep.subr.bf16.mxu0 0
    %1442 = vmatpush1.bf16.msra.mxu0 0
    %1443 = vmatprep.subr.bf16.mxu0 0
    %1444 = vmatpush1.bf16.msra.mxu0 0
    %1445 = vmatprep.mubr.bf16.mxu0 0
    %1446 = vmatmul.mubr.bf16.gmra.mrb[0].mxu0 %v1288
    %v1447 = vpop.f32.mrb[0].mxu0
    %v1448 = vadd.f32 %v1366, %v1447
    %v1449 = vpop.f32.mrb[0].mxu0
    %v1450 = vadd.f32 %v1368, %v1449
    %v1451 = vpop.f32.mrb[0].mxu0
    %v1452 = vpop.f32.mrb[0].mxu0
    %1453 = vdwg.mxu0
    %v1454 = vadd.f32 %v1407, %v637
    %v1455 = vadd.f32 %v1409, %v641
    %v1456 = vadd.f32 %v1448, %v645
    %v1457 = vadd.f32 %v1450, %v649
    %v1458 = vxor.u32 %v1454, 2147483648
    %v1459 = vmul.f32 %v1458, 1.442695
    %v1460 = vpow.pop %v1459
    %v1461 = vadd.f32 %v1460, 1.0
    %v1462 = vrcp.pop %v1461
    %v1463 = vmul.f32 1.0, %v1462
    %v1464 = vxor.u32 %v1455, 2147483648
    %v1465 = vmul.f32 %v1464, 1.442695
    %v1466 = vpow.pop %v1465
    %v1467 = vadd.f32 %v1466, 1.0
    %v1468 = vrcp.pop %v1467
    %v1469 = vmul.f32 1.0, %v1468
    %v1470 = vmul.f32 %v1463, %v1457
    %v1471 = vadd.f32 %v1456, %v1470
    %v1472 = vtanh.pop %v1471
    %v1473 = vsub.f32 1.0, %v1469
    %v1474 = vmul.f32 %v1473, %v1472
    %v1475 = vmul.f32 %v1469, %v1276
    %v1476 = vadd.f32 %v1474, %v1475
    %vm1477 = vcmp.eq.s32.totalorder %v75, 4
    %v1478 = vlaneseq
    %v1479 = vshrl.u32 %v1478, 7
    %v1480 = vsub.s32 0, %v1479
    %v1481 = vrot.slane %v1476, %v1480
    %v1482 = vsel %vm1477, %v1481, %v1282
    %s1483 = sadd.s32 %s77, 5
    %s1484 = sld [smem:[#allocation4 + %s1483]]
    %s1485 = scalar_lea.vmem [#allocation5], %s1484
    %v1486 = vld [vmem:[%s1485] sm:$0x1]
    %v1487 = vmax.f32 %v1486, 0.0
    %v1488 = vpack.c.bf16 %v1487, %v1487
    %v1489 = vpack.c.bf16 %v1476, %v1476
    %1490 = vmatprep.subr.bf16.mxu0 %v245
    %1491 = vmatpush1.bf16.msra.mxu0 %v244
    %1492 = vmatprep.subr.bf16.mxu0 %v249
    %1493 = vmatpush1.bf16.msra.mxu0 %v248
    %1494 = vmatprep.subr.bf16.mxu0 %v253
    %1495 = vmatpush1.bf16.msra.mxu0 %v252
    %1496 = vmatprep.subr.bf16.mxu0 %v257
    %1497 = vmatpush1.bf16.msra.mxu0 %v256
    %1498 = vmatprep.subr.bf16.mxu0 %v261
    %1499 = vmatpush1.bf16.msra.mxu0 %v260
    %1500 = vmatprep.subr.bf16.mxu0 %v265
    %1501 = vmatpush1.bf16.msra.mxu0 %v264
    %1502 = vmatprep.subr.bf16.mxu0 %v269
    %1503 = vmatpush1.bf16.msra.mxu0 %v268
    %1504 = vmatprep.subr.bf16.mxu0 %v273
    %1505 = vmatpush1.bf16.msra.mxu0 %v272
    %1506 = vmatprep.subr.bf16.mxu0 0
    %1507 = vmatpush1.bf16.msra.mxu0 0
    %1508 = vmatprep.subr.bf16.mxu0 0
    %1509 = vmatpush1.bf16.msra.mxu0 0
    %1510 = vmatprep.subr.bf16.mxu0 0
    %1511 = vmatpush1.bf16.msra.mxu0 0
    %1512 = vmatprep.subr.bf16.mxu0 0
    %1513 = vmatpush1.bf16.msra.mxu0 0
    %1514 = vmatprep.subr.bf16.mxu0 0
    %1515 = vmatpush1.bf16.msra.mxu0 0
    %1516 = vmatprep.subr.bf16.mxu0 0
    %1517 = vmatpush1.bf16.msra.mxu0 0
    %1518 = vmatprep.subr.bf16.mxu0 0
    %1519 = vmatpush1.bf16.msra.mxu0 0
    %1520 = vmatprep.subr.bf16.mxu0 0
    %1521 = vmatpush1.bf16.msra.mxu0 0
    %1522 = vmatprep.mubr.bf16.mxu0 0
    %1523 = vmatmul.mubr.bf16.gmra.mrb[0].mxu0 %v1489
    %v1524 = vpop.f32.mrb[0].mxu0
    %v1525 = vadd.f32 0.0, %v1524
    %v1526 = vpop.f32.mrb[0].mxu0
    %v1527 = vadd.f32 0.0, %v1526
    %v1528 = vpop.f32.mrb[0].mxu0
    %v1529 = vpop.f32.mrb[0].mxu0
    %1530 = vdwg.mxu0
    %1531 = vmatprep.subr.bf16.mxu0 %v247
    %1532 = vmatpush1.bf16.msra.mxu0 %v246
    %1533 = vmatprep.subr.bf16.mxu0 %v251
    %1534 = vmatpush1.bf16.msra.mxu0 %v250
    %1535 = vmatprep.subr.bf16.mxu0 %v255
    %1536 = vmatpush1.bf16.msra.mxu0 %v254
    %1537 = vmatprep.subr.bf16.mxu0 %v259
    %1538 = vmatpush1.bf16.msra.mxu0 %v258
    %1539 = vmatprep.subr.bf16.mxu0 %v263
    %1540 = vmatpush1.bf16.msra.mxu0 %v262
    %1541 = vmatprep.subr.bf16.mxu0 %v267
    %1542 = vmatpush1.bf16.msra.mxu0 %v266
    %1543 = vmatprep.subr.bf16.mxu0 %v271
    %1544 = vmatpush1.bf16.msra.mxu0 %v270
    %1545 = vmatprep.subr.bf16.mxu0 %v275
    %1546 = vmatpush1.bf16.msra.mxu0 %v274
    %1547 = vmatprep.subr.bf16.mxu0 0
    %1548 = vmatpush1.bf16.msra.mxu0 0
    %1549 = vmatprep.subr.bf16.mxu0 0
    %1550 = vmatpush1.bf16.msra.mxu0 0
    %1551 = vmatprep.subr.bf16.mxu0 0
    %1552 = vmatpush1.bf16.msra.mxu0 0
    %1553 = vmatprep.subr.bf16.mxu0 0
    %1554 = vmatpush1.bf16.msra.mxu0 0
    %1555 = vmatprep.subr.bf16.mxu0 0
    %1556 = vmatpush1.bf16.msra.mxu0 0
    %1557 = vmatprep.subr.bf16.mxu0 0
    %1558 = vmatpush1.bf16.msra.mxu0 0
    %1559 = vmatprep.subr.bf16.mxu0 0
    %1560 = vmatpush1.bf16.msra.mxu0 0
    %1561 = vmatprep.subr.bf16.mxu0 0
    %1562 = vmatpush1.bf16.msra.mxu0 0
    %1563 = vmatprep.mubr.bf16.mxu0 0
    %1564 = vmatmul.mubr.bf16.gmra.mrb[0].mxu0 %v1489
    %v1565 = vpop.f32.mrb[0].mxu0
    %v1566 = vadd.f32 0.0, %v1565
    %v1567 = vpop.f32.mrb[0].mxu0
    %v1568 = vadd.f32 0.0, %v1567
    %v1569 = vpop.f32.mrb[0].mxu0
    %v1570 = vpop.f32.mrb[0].mxu0
    %1571 = vdwg.mxu0
    %1572 = vmatprep.subr.bf16.mxu0 %v487
    %1573 = vmatpush1.bf16.msra.mxu0 %v486
    %1574 = vmatprep.subr.bf16.mxu0 %v491
    %1575 = vmatpush1.bf16.msra.mxu0 %v490
    %1576 = vmatprep.subr.bf16.mxu0 %v495
    %1577 = vmatpush1.bf16.msra.mxu0 %v494
    %1578 = vmatprep.subr.bf16.mxu0 %v499
    %1579 = vmatpush1.bf16.msra.mxu0 %v498
    %1580 = vmatprep.subr.bf16.mxu0 %v503
    %1581 = vmatpush1.bf16.msra.mxu0 %v502
    %1582 = vmatprep.subr.bf16.mxu0 %v507
    %1583 = vmatpush1.bf16.msra.mxu0 %v506
    %1584 = vmatprep.subr.bf16.mxu0 %v511
    %1585 = vmatpush1.bf16.msra.mxu0 %v510
    %1586 = vmatprep.subr.bf16.mxu0 %v515
    %1587 = vmatpush1.bf16.msra.mxu0 %v514
    %1588 = vmatprep.subr.bf16.mxu0 0
    %1589 = vmatpush1.bf16.msra.mxu0 0
    %1590 = vmatprep.subr.bf16.mxu0 0
    %1591 = vmatpush1.bf16.msra.mxu0 0
    %1592 = vmatprep.subr.bf16.mxu0 0
    %1593 = vmatpush1.bf16.msra.mxu0 0
    %1594 = vmatprep.subr.bf16.mxu0 0
    %1595 = vmatpush1.bf16.msra.mxu0 0
    %1596 = vmatprep.subr.bf16.mxu0 0
    %1597 = vmatpush1.bf16.msra.mxu0 0
    %1598 = vmatprep.subr.bf16.mxu0 0
    %1599 = vmatpush1.bf16.msra.mxu0 0
    %1600 = vmatprep.subr.bf16.mxu0 0
    %1601 = vmatpush1.bf16.msra.mxu0 0
    %1602 = vmatprep.subr.bf16.mxu0 0
    %1603 = vmatpush1.bf16.msra.mxu0 0
    %1604 = vmatprep.mubr.bf16.mxu0 0
    %1605 = vmatmul.mubr.bf16.gmra.mrb[0].mxu0 %v1488
    %v1606 = vpop.f32.mrb[0].mxu0
    %v1607 = vadd.f32 %v1525, %v1606
    %v1608 = vpop.f32.mrb[0].mxu0
    %v1609 = vadd.f32 %v1527, %v1608
    %v1610 = vpop.f32.mrb[0].mxu0
    %v1611 = vpop.f32.mrb[0].mxu0
    %1612 = vdwg.mxu0
    %1613 = vmatprep.subr.bf16.mxu0 %v489
    %1614 = vmatpush1.bf16.msra.mxu0 %v488
    %1615 = vmatprep.subr.bf16.mxu0 %v493
    %1616 = vmatpush1.bf16.msra.mxu0 %v492
    %1617 = vmatprep.subr.bf16.mxu0 %v497
    %1618 = vmatpush1.bf16.msra.mxu0 %v496
    %1619 = vmatprep.subr.bf16.mxu0 %v501
    %1620 = vmatpush1.bf16.msra.mxu0 %v500
    %1621 = vmatprep.subr.bf16.mxu0 %v505
    %1622 = vmatpush1.bf16.msra.mxu0 %v504
    %1623 = vmatprep.subr.bf16.mxu0 %v509
    %1624 = vmatpush1.bf16.msra.mxu0 %v508
    %1625 = vmatprep.subr.bf16.mxu0 %v513
    %1626 = vmatpush1.bf16.msra.mxu0 %v512
    %1627 = vmatprep.subr.bf16.mxu0 %v517
    %1628 = vmatpush1.bf16.msra.mxu0 %v516
    %1629 = vmatprep.subr.bf16.mxu0 0
    %1630 = vmatpush1.bf16.msra.mxu0 0
    %1631 = vmatprep.subr.bf16.mxu0 0
    %1632 = vmatpush1.bf16.msra.mxu0 0
    %1633 = vmatprep.subr.bf16.mxu0 0
    %1634 = vmatpush1.bf16.msra.mxu0 0
    %1635 = vmatprep.subr.bf16.mxu0 0
    %1636 = vmatpush1.bf16.msra.mxu0 0
    %1637 = vmatprep.subr.bf16.mxu0 0
    %1638 = vmatpush1.bf16.msra.mxu0 0
    %1639 = vmatprep.subr.bf16.mxu0 0
    %1640 = vmatpush1.bf16.msra.mxu0 0
    %1641 = vmatprep.subr.bf16.mxu0 0
    %1642 = vmatpush1.bf16.msra.mxu0 0
    %1643 = vmatprep.subr.bf16.mxu0 0
    %1644 = vmatpush1.bf16.msra.mxu0 0
    %1645 = vmatprep.mubr.bf16.mxu0 0
    %1646 = vmatmul.mubr.bf16.gmra.mrb[0].mxu0 %v1488
    %v1647 = vpop.f32.mrb[0].mxu0
    %v1648 = vadd.f32 %v1566, %v1647
    %v1649 = vpop.f32.mrb[0].mxu0
    %v1650 = vadd.f32 %v1568, %v1649
    %v1651 = vpop.f32.mrb[0].mxu0
    %v1652 = vpop.f32.mrb[0].mxu0
    %1653 = vdwg.mxu0
    %v1654 = vadd.f32 %v1607, %v637
    %v1655 = vadd.f32 %v1609, %v641
    %v1656 = vadd.f32 %v1648, %v645
    %v1657 = vadd.f32 %v1650, %v649
    %v1658 = vxor.u32 %v1654, 2147483648
    %v1659 = vmul.f32 %v1658, 1.442695
    %v1660 = vpow.pop %v1659
    %v1661 = vadd.f32 %v1660, 1.0
    %v1662 = vrcp.pop %v1661
    %v1663 = vmul.f32 1.0, %v1662
    %v1664 = vxor.u32 %v1655, 2147483648
    %v1665 = vmul.f32 %v1664, 1.442695
    %v1666 = vpow.pop %v1665
    %v1667 = vadd.f32 %v1666, 1.0
    %v1668 = vrcp.pop %v1667
    %v1669 = vmul.f32 1.0, %v1668
    %v1670 = vmul.f32 %v1663, %v1657
    %v1671 = vadd.f32 %v1656, %v1670
    %v1672 = vtanh.pop %v1671
    %v1673 = vsub.f32 1.0, %v1669
    %v1674 = vmul.f32 %v1673, %v1672
    %v1675 = vmul.f32 %v1669, %v1476
    %v1676 = vadd.f32 %v1674, %v1675
    %vm1677 = vcmp.eq.s32.totalorder %v75, 5
    %v1678 = vlaneseq
    %v1679 = vshrl.u32 %v1678, 7
    %v1680 = vsub.s32 0, %v1679
    %v1681 = vrot.slane %v1676, %v1680
    %v1682 = vsel %vm1677, %v1681, %v1482
    %s1683 = sadd.s32 %s77, 6
    %s1684 = sld [smem:[#allocation4 + %s1683]]
    %s1685 = scalar_lea.vmem [#allocation5], %s1684
    %v1686 = vld [vmem:[%s1685] sm:$0x1]
    %v1687 = vmax.f32 %v1686, 0.0
    %v1688 = vpack.c.bf16 %v1687, %v1687
    %v1689 = vpack.c.bf16 %v1676, %v1676
    %1690 = vmatprep.subr.bf16.mxu0 %v245
    %1691 = vmatpush1.bf16.msra.mxu0 %v244
    %1692 = vmatprep.subr.bf16.mxu0 %v249
    %1693 = vmatpush1.bf16.msra.mxu0 %v248
    %1694 = vmatprep.subr.bf16.mxu0 %v253
    %1695 = vmatpush1.bf16.msra.mxu0 %v252
    %1696 = vmatprep.subr.bf16.mxu0 %v257
    %1697 = vmatpush1.bf16.msra.mxu0 %v256
    %1698 = vmatprep.subr.bf16.mxu0 %v261
    %1699 = vmatpush1.bf16.msra.mxu0 %v260
    %1700 = vmatprep.subr.bf16.mxu0 %v265
    %1701 = vmatpush1.bf16.msra.mxu0 %v264
    %1702 = vmatprep.subr.bf16.mxu0 %v269
    %1703 = vmatpush1.bf16.msra.mxu0 %v268
    %1704 = vmatprep.subr.bf16.mxu0 %v273
    %1705 = vmatpush1.bf16.msra.mxu0 %v272
    %1706 = vmatprep.subr.bf16.mxu0 0
    %1707 = vmatpush1.bf16.msra.mxu0 0
    %1708 = vmatprep.subr.bf16.mxu0 0
    %1709 = vmatpush1.bf16.msra.mxu0 0
    %1710 = vmatprep.subr.bf16.mxu0 0
    %1711 = vmatpush1.bf16.msra.mxu0 0
    %1712 = vmatprep.subr.bf16.mxu0 0
    %1713 = vmatpush1.bf16.msra.mxu0 0
    %1714 = vmatprep.subr.bf16.mxu0 0
    %1715 = vmatpush1.bf16.msra.mxu0 0
    %1716 = vmatprep.subr.bf16.mxu0 0
    %1717 = vmatpush1.bf16.msra.mxu0 0
    %1718 = vmatprep.subr.bf16.mxu0 0
    %1719 = vmatpush1.bf16.msra.mxu0 0
    %1720 = vmatprep.subr.bf16.mxu0 0
    %1721 = vmatpush1.bf16.msra.mxu0 0
    %1722 = vmatprep.mubr.bf16.mxu0 0
    %1723 = vmatmul.mubr.bf16.gmra.mrb[0].mxu0 %v1689
    %v1724 = vpop.f32.mrb[0].mxu0
    %v1725 = vadd.f32 0.0, %v1724
    %v1726 = vpop.f32.mrb[0].mxu0
    %v1727 = vadd.f32 0.0, %v1726
    %v1728 = vpop.f32.mrb[0].mxu0
    %v1729 = vpop.f32.mrb[0].mxu0
    %1730 = vdwg.mxu0
    %1731 = vmatprep.subr.bf16.mxu0 %v247
    %1732 = vmatpush1.bf16.msra.mxu0 %v246
    %1733 = vmatprep.subr.bf16.mxu0 %v251
    %1734 = vmatpush1.bf16.msra.mxu0 %v250
    %1735 = vmatprep.subr.bf16.mxu0 %v255
    %1736 = vmatpush1.bf16.msra.mxu0 %v254
    %1737 = vmatprep.subr.bf16.mxu0 %v259
    %1738 = vmatpush1.bf16.msra.mxu0 %v258
    %1739 = vmatprep.subr.bf16.mxu0 %v263
    %1740 = vmatpush1.bf16.msra.mxu0 %v262
    %1741 = vmatprep.subr.bf16.mxu0 %v267
    %1742 = vmatpush1.bf16.msra.mxu0 %v266
    %1743 = vmatprep.subr.bf16.mxu0 %v271
    %1744 = vmatpush1.bf16.msra.mxu0 %v270
    %1745 = vmatprep.subr.bf16.mxu0 %v275
    %1746 = vmatpush1.bf16.msra.mxu0 %v274
    %1747 = vmatprep.subr.bf16.mxu0 0
    %1748 = vmatpush1.bf16.msra.mxu0 0
    %1749 = vmatprep.subr.bf16.mxu0 0
    %1750 = vmatpush1.bf16.msra.mxu0 0
    %1751 = vmatprep.subr.bf16.mxu0 0
    %1752 = vmatpush1.bf16.msra.mxu0 0
    %1753 = vmatprep.subr.bf16.mxu0 0
    %1754 = vmatpush1.bf16.msra.mxu0 0
    %1755 = vmatprep.subr.bf16.mxu0 0
    %1756 = vmatpush1.bf16.msra.mxu0 0
    %1757 = vmatprep.subr.bf16.mxu0 0
    %1758 = vmatpush1.bf16.msra.mxu0 0
    %1759 = vmatprep.subr.bf16.mxu0 0
    %1760 = vmatpush1.bf16.msra.mxu0 0
    %1761 = vmatprep.subr.bf16.mxu0 0
    %1762 = vmatpush1.bf16.msra.mxu0 0
    %1763 = vmatprep.mubr.bf16.mxu0 0
    %1764 = vmatmul.mubr.bf16.gmra.mrb[0].mxu0 %v1689
    %v1765 = vpop.f32.mrb[0].mxu0
    %v1766 = vadd.f32 0.0, %v1765
    %v1767 = vpop.f32.mrb[0].mxu0
    %v1768 = vadd.f32 0.0, %v1767
    %v1769 = vpop.f32.mrb[0].mxu0
    %v1770 = vpop.f32.mrb[0].mxu0
    %1771 = vdwg.mxu0
    %1772 = vmatprep.subr.bf16.mxu0 %v487
    %1773 = vmatpush1.bf16.msra.mxu0 %v486
    %1774 = vmatprep.subr.bf16.mxu0 %v491
    %1775 = vmatpush1.bf16.msra.mxu0 %v490
    %1776 = vmatprep.subr.bf16.mxu0 %v495
    %1777 = vmatpush1.bf16.msra.mxu0 %v494
    %1778 = vmatprep.subr.bf16.mxu0 %v499
    %1779 = vmatpush1.bf16.msra.mxu0 %v498
    %1780 = vmatprep.subr.bf16.mxu0 %v503
    %1781 = vmatpush1.bf16.msra.mxu0 %v502
    %1782 = vmatprep.subr.bf16.mxu0 %v507
    %1783 = vmatpush1.bf16.msra.mxu0 %v506
    %1784 = vmatprep.subr.bf16.mxu0 %v511
    %1785 = vmatpush1.bf16.msra.mxu0 %v510
    %1786 = vmatprep.subr.bf16.mxu0 %v515
    %1787 = vmatpush1.bf16.msra.mxu0 %v514
    %1788 = vmatprep.subr.bf16.mxu0 0
    %1789 = vmatpush1.bf16.msra.mxu0 0
    %1790 = vmatprep.subr.bf16.mxu0 0
    %1791 = vmatpush1.bf16.msra.mxu0 0
    %1792 = vmatprep.subr.bf16.mxu0 0
    %1793 = vmatpush1.bf16.msra.mxu0 0
    %1794 = vmatprep.subr.bf16.mxu0 0
    %1795 = vmatpush1.bf16.msra.mxu0 0
    %1796 = vmatprep.subr.bf16.mxu0 0
    %1797 = vmatpush1.bf16.msra.mxu0 0
    %1798 = vmatprep.subr.bf16.mxu0 0
    %1799 = vmatpush1.bf16.msra.mxu0 0
    %1800 = vmatprep.subr.bf16.mxu0 0
    %1801 = vmatpush1.bf16.msra.mxu0 0
    %1802 = vmatprep.subr.bf16.mxu0 0
    %1803 = vmatpush1.bf16.msra.mxu0 0
    %1804 = vmatprep.mubr.bf16.mxu0 0
    %1805 = vmatmul.mubr.bf16.gmra.mrb[0].mxu0 %v1688
    %v1806 = vpop.f32.mrb[0].mxu0
    %v1807 = vadd.f32 %v1725, %v1806
    %v1808 = vpop.f32.mrb[0].mxu0
    %v1809 = vadd.f32 %v1727, %v1808
    %v1810 = vpop.f32.mrb[0].mxu0
    %v1811 = vpop.f32.mrb[0].mxu0
    %1812 = vdwg.mxu0
    %1813 = vmatprep.subr.bf16.mxu0 %v489
    %1814 = vmatpush1.bf16.msra.mxu0 %v488
    %1815 = vmatprep.subr.bf16.mxu0 %v493
    %1816 = vmatpush1.bf16.msra.mxu0 %v492
    %1817 = vmatprep.subr.bf16.mxu0 %v497
    %1818 = vmatpush1.bf16.msra.mxu0 %v496
    %1819 = vmatprep.subr.bf16.mxu0 %v501
    %1820 = vmatpush1.bf16.msra.mxu0 %v500
    %1821 = vmatprep.subr.bf16.mxu0 %v505
    %1822 = vmatpush1.bf16.msra.mxu0 %v504
    %1823 = vmatprep.subr.bf16.mxu0 %v509
    %1824 = vmatpush1.bf16.msra.mxu0 %v508
    %1825 = vmatprep.subr.bf16.mxu0 %v513
    %1826 = vmatpush1.bf16.msra.mxu0 %v512
    %1827 = vmatprep.subr.bf16.mxu0 %v517
    %1828 = vmatpush1.bf16.msra.mxu0 %v516
    %1829 = vmatprep.subr.bf16.mxu0 0
    %1830 = vmatpush1.bf16.msra.mxu0 0
    %1831 = vmatprep.subr.bf16.mxu0 0
    %1832 = vmatpush1.bf16.msra.mxu0 0
    %1833 = vmatprep.subr.bf16.mxu0 0
    %1834 = vmatpush1.bf16.msra.mxu0 0
    %1835 = vmatprep.subr.bf16.mxu0 0
    %1836 = vmatpush1.bf16.msra.mxu0 0
    %1837 = vmatprep.subr.bf16.mxu0 0
    %1838 = vmatpush1.bf16.msra.mxu0 0
    %1839 = vmatprep.subr.bf16.mxu0 0
    %1840 = vmatpush1.bf16.msra.mxu0 0
    %1841 = vmatprep.subr.bf16.mxu0 0
    %1842 = vmatpush1.bf16.msra.mxu0 0
    %1843 = vmatprep.subr.bf16.mxu0 0
    %1844 = vmatpush1.bf16.msra.mxu0 0
    %1845 = vmatprep.mubr.bf16.mxu0 0
    %1846 = vmatmul.mubr.bf16.gmra.mrb[0].mxu0 %v1688
    %v1847 = vpop.f32.mrb[0].mxu0
    %v1848 = vadd.f32 %v1766, %v1847
    %v1849 = vpop.f32.mrb[0].mxu0
    %v1850 = vadd.f32 %v1768, %v1849
    %v1851 = vpop.f32.mrb[0].mxu0
    %v1852 = vpop.f32.mrb[0].mxu0
    %1853 = vdwg.mxu0
    %v1854 = vadd.f32 %v1807, %v637
    %v1855 = vadd.f32 %v1809, %v641
    %v1856 = vadd.f32 %v1848, %v645
    %v1857 = vadd.f32 %v1850, %v649
    %v1858 = vxor.u32 %v1854, 2147483648
    %v1859 = vmul.f32 %v1858, 1.442695
    %v1860 = vpow.pop %v1859
    %v1861 = vadd.f32 %v1860, 1.0
    %v1862 = vrcp.pop %v1861
    %v1863 = vmul.f32 1.0, %v1862
    %v1864 = vxor.u32 %v1855, 2147483648
    %v1865 = vmul.f32 %v1864, 1.442695
    %v1866 = vpow.pop %v1865
    %v1867 = vadd.f32 %v1866, 1.0
    %v1868 = vrcp.pop %v1867
    %v1869 = vmul.f32 1.0, %v1868
    %v1870 = vmul.f32 %v1863, %v1857
    %v1871 = vadd.f32 %v1856, %v1870
    %v1872 = vtanh.pop %v1871
    %v1873 = vsub.f32 1.0, %v1869
    %v1874 = vmul.f32 %v1873, %v1872
    %v1875 = vmul.f32 %v1869, %v1676
    %v1876 = vadd.f32 %v1874, %v1875
    %vm1877 = vcmp.eq.s32.totalorder %v75, 6
    %v1878 = vlaneseq
    %v1879 = vshrl.u32 %v1878, 7
    %v1880 = vsub.s32 0, %v1879
    %v1881 = vrot.slane %v1876, %v1880
    %v1882 = vsel %vm1877, %v1881, %v1682
    %s1883 = sadd.s32 %s77, 7
    %s1884 = sld [smem:[#allocation4 + %s1883]]
    %s1885 = scalar_lea.vmem [#allocation5], %s1884
    %v1886 = vld [vmem:[%s1885] sm:$0x1]
    %v1887 = vmax.f32 %v1886, 0.0
    %v1888 = vpack.c.bf16 %v1887, %v1887
    %v1889 = vpack.c.bf16 %v1876, %v1876
    %1890 = vmatprep.subr.bf16.mxu0 %v245
    %1891 = vmatpush1.bf16.msra.mxu0 %v244
    %1892 = vmatprep.subr.bf16.mxu0 %v249
    %1893 = vmatpush1.bf16.msra.mxu0 %v248
    %1894 = vmatprep.subr.bf16.mxu0 %v253
    %1895 = vmatpush1.bf16.msra.mxu0 %v252
    %1896 = vmatprep.subr.bf16.mxu0 %v257
    %1897 = vmatpush1.bf16.msra.mxu0 %v256
    %1898 = vmatprep.subr.bf16.mxu0 %v261
    %1899 = vmatpush1.bf16.msra.mxu0 %v260
    %1900 = vmatprep.subr.bf16.mxu0 %v265
    %1901 = vmatpush1.bf16.msra.mxu0 %v264
    %1902 = vmatprep.subr.bf16.mxu0 %v269
    %1903 = vmatpush1.bf16.msra.mxu0 %v268
    %1904 = vmatprep.subr.bf16.mxu0 %v273
    %1905 = vmatpush1.bf16.msra.mxu0 %v272
    %1906 = vmatprep.subr.bf16.mxu0 0
    %1907 = vmatpush1.bf16.msra.mxu0 0
    %1908 = vmatprep.subr.bf16.mxu0 0
    %1909 = vmatpush1.bf16.msra.mxu0 0
    %1910 = vmatprep.subr.bf16.mxu0 0
    %1911 = vmatpush1.bf16.msra.mxu0 0
    %1912 = vmatprep.subr.bf16.mxu0 0
    %1913 = vmatpush1.bf16.msra.mxu0 0
    %1914 = vmatprep.subr.bf16.mxu0 0
    %1915 = vmatpush1.bf16.msra.mxu0 0
    %1916 = vmatprep.subr.bf16.mxu0 0
    %1917 = vmatpush1.bf16.msra.mxu0 0
    %1918 = vmatprep.subr.bf16.mxu0 0
    %1919 = vmatpush1.bf16.msra.mxu0 0
    %1920 = vmatprep.subr.bf16.mxu0 0
    %1921 = vmatpush1.bf16.msra.mxu0 0
    %1922 = vmatprep.mubr.bf16.mxu0 0
    %1923 = vmatmul.mubr.bf16.gmra.mrb[0].mxu0 %v1889
    %v1924 = vpop.f32.mrb[0].mxu0
    %v1925 = vadd.f32 0.0, %v1924
    %v1926 = vpop.f32.mrb[0].mxu0
    %v1927 = vadd.f32 0.0, %v1926
    %v1928 = vpop.f32.mrb[0].mxu0
    %v1929 = vpop.f32.mrb[0].mxu0
    %1930 = vdwg.mxu0
    %1931 = vmatprep.subr.bf16.mxu0 %v247
    %1932 = vmatpush1.bf16.msra.mxu0 %v246
    %1933 = vmatprep.subr.bf16.mxu0 %v251
    %1934 = vmatpush1.bf16.msra.mxu0 %v250
    %1935 = vmatprep.subr.bf16.mxu0 %v255
    %1936 = vmatpush1.bf16.msra.mxu0 %v254
    %1937 = vmatprep.subr.bf16.mxu0 %v259
    %1938 = vmatpush1.bf16.msra.mxu0 %v258
    %1939 = vmatprep.subr.bf16.mxu0 %v263
    %1940 = vmatpush1.bf16.msra.mxu0 %v262
    %1941 = vmatprep.subr.bf16.mxu0 %v267
    %1942 = vmatpush1.bf16.msra.mxu0 %v266
    %1943 = vmatprep.subr.bf16.mxu0 %v271
    %1944 = vmatpush1.bf16.msra.mxu0 %v270
    %1945 = vmatprep.subr.bf16.mxu0 %v275
    %1946 = vmatpush1.bf16.msra.mxu0 %v274
    %1947 = vmatprep.subr.bf16.mxu0 0
    %1948 = vmatpush1.bf16.msra.mxu0 0
    %1949 = vmatprep.subr.bf16.mxu0 0
    %1950 = vmatpush1.bf16.msra.mxu0 0
    %1951 = vmatprep.subr.bf16.mxu0 0
    %1952 = vmatpush1.bf16.msra.mxu0 0
    %1953 = vmatprep.subr.bf16.mxu0 0
    %1954 = vmatpush1.bf16.msra.mxu0 0
    %1955 = vmatprep.subr.bf16.mxu0 0
    %1956 = vmatpush1.bf16.msra.mxu0 0
    %1957 = vmatprep.subr.bf16.mxu0 0
    %1958 = vmatpush1.bf16.msra.mxu0 0
    %1959 = vmatprep.subr.bf16.mxu0 0
    %1960 = vmatpush1.bf16.msra.mxu0 0
    %1961 = vmatprep.subr.bf16.mxu0 0
    %1962 = vmatpush1.bf16.msra.mxu0 0
    %1963 = vmatprep.mubr.bf16.mxu0 0
    %1964 = vmatmul.mubr.bf16.gmra.mrb[0].mxu0 %v1889
    %v1965 = vpop.f32.mrb[0].mxu0
    %v1966 = vadd.f32 0.0, %v1965
    %v1967 = vpop.f32.mrb[0].mxu0
    %v1968 = vadd.f32 0.0, %v1967
    %v1969 = vpop.f32.mrb[0].mxu0
    %v1970 = vpop.f32.mrb[0].mxu0
    %1971 = vdwg.mxu0
    %1972 = vmatprep.subr.bf16.mxu0 %v487
    %1973 = vmatpush1.bf16.msra.mxu0 %v486
    %1974 = vmatprep.subr.bf16.mxu0 %v491
    %1975 = vmatpush1.bf16.msra.mxu0 %v490
    %1976 = vmatprep.subr.bf16.mxu0 %v495
    %1977 = vmatpush1.bf16.msra.mxu0 %v494
    %1978 = vmatprep.subr.bf16.mxu0 %v499
    %1979 = vmatpush1.bf16.msra.mxu0 %v498
    %1980 = vmatprep.subr.bf16.mxu0 %v503
    %1981 = vmatpush1.bf16.msra.mxu0 %v502
    %1982 = vmatprep.subr.bf16.mxu0 %v507
    %1983 = vmatpush1.bf16.msra.mxu0 %v506
    %1984 = vmatprep.subr.bf16.mxu0 %v511
    %1985 = vmatpush1.bf16.msra.mxu0 %v510
    %1986 = vmatprep.subr.bf16.mxu0 %v515
    %1987 = vmatpush1.bf16.msra.mxu0 %v514
    %1988 = vmatprep.subr.bf16.mxu0 0
    %1989 = vmatpush1.bf16.msra.mxu0 0
    %1990 = vmatprep.subr.bf16.mxu0 0
    %1991 = vmatpush1.bf16.msra.mxu0 0
    %1992 = vmatprep.subr.bf16.mxu0 0
    %1993 = vmatpush1.bf16.msra.mxu0 0
    %1994 = vmatprep.subr.bf16.mxu0 0
    %1995 = vmatpush1.bf16.msra.mxu0 0
    %1996 = vmatprep.subr.bf16.mxu0 0
    %1997 = vmatpush1.bf16.msra.mxu0 0
    %1998 = vmatprep.subr.bf16.mxu0 0
    %1999 = vmatpush1.bf16.msra.mxu0 0
    %2000 = vmatprep.subr.bf16.mxu0 0
    %2001 = vmatpush1.bf16.msra.mxu0 0
    %2002 = vmatprep.subr.bf16.mxu0 0
    %2003 = vmatpush1.bf16.msra.mxu0 0
    %2004 = vmatprep.mubr.bf16.mxu0 0
    %2005 = vmatmul.mubr.bf16.gmra.mrb[0].mxu0 %v1888
    %v2006 = vpop.f32.mrb[0].mxu0
    %v2007 = vadd.f32 %v1925, %v2006
    %v2008 = vpop.f32.mrb[0].mxu0
    %v2009 = vadd.f32 %v1927, %v2008
    %v2010 = vpop.f32.mrb[0].mxu0
    %v2011 = vpop.f32.mrb[0].mxu0
    %2012 = vdwg.mxu0
    %2013 = vmatprep.subr.bf16.mxu0 %v489
    %2014 = vmatpush1.bf16.msra.mxu0 %v488
    %2015 = vmatprep.subr.bf16.mxu0 %v493
    %2016 = vmatpush1.bf16.msra.mxu0 %v492
    %2017 = vmatprep.subr.bf16.mxu0 %v497
    %2018 = vmatpush1.bf16.msra.mxu0 %v496
    %2019 = vmatprep.subr.bf16.mxu0 %v501
    %2020 = vmatpush1.bf16.msra.mxu0 %v500
    %2021 = vmatprep.subr.bf16.mxu0 %v505
    %2022 = vmatpush1.bf16.msra.mxu0 %v504
    %2023 = vmatprep.subr.bf16.mxu0 %v509
    %2024 = vmatpush1.bf16.msra.mxu0 %v508
    %2025 = vmatprep.subr.bf16.mxu0 %v513
    %2026 = vmatpush1.bf16.msra.mxu0 %v512
    %2027 = vmatprep.subr.bf16.mxu0 %v517
    %2028 = vmatpush1.bf16.msra.mxu0 %v516
    %2029 = vmatprep.subr.bf16.mxu0 0
    %2030 = vmatpush1.bf16.msra.mxu0 0
    %2031 = vmatprep.subr.bf16.mxu0 0
    %2032 = vmatpush1.bf16.msra.mxu0 0
    %2033 = vmatprep.subr.bf16.mxu0 0
    %2034 = vmatpush1.bf16.msra.mxu0 0
    %2035 = vmatprep.subr.bf16.mxu0 0
    %2036 = vmatpush1.bf16.msra.mxu0 0
    %2037 = vmatprep.subr.bf16.mxu0 0
    %2038 = vmatpush1.bf16.msra.mxu0 0
    %2039 = vmatprep.subr.bf16.mxu0 0
    %2040 = vmatpush1.bf16.msra.mxu0 0
    %2041 = vmatprep.subr.bf16.mxu0 0
    %2042 = vmatpush1.bf16.msra.mxu0 0
    %2043 = vmatprep.subr.bf16.mxu0 0
    %2044 = vmatpush1.bf16.msra.mxu0 0
    %2045 = vmatprep.mubr.bf16.mxu0 0
    %2046 = vmatmul.mubr.bf16.gmra.mrb[0].mxu0 %v1888
    %v2047 = vpop.f32.mrb[0].mxu0
    %v2048 = vadd.f32 %v1966, %v2047
    %v2049 = vpop.f32.mrb[0].mxu0
    %v2050 = vadd.f32 %v1968, %v2049
    %v2051 = vpop.f32.mrb[0].mxu0
    %v2052 = vpop.f32.mrb[0].mxu0
    %2053 = vdwg.mxu0
    %v2054 = vadd.f32 %v2007, %v637
    %v2055 = vadd.f32 %v2009, %v641
    %v2056 = vadd.f32 %v2048, %v645
    %v2057 = vadd.f32 %v2050, %v649
    %v2058 = vxor.u32 %v2054, 2147483648
    %v2059 = vmul.f32 %v2058, 1.442695
    %v2060 = vpow.pop %v2059
    %v2061 = vadd.f32 %v2060, 1.0
    %v2062 = vrcp.pop %v2061
    %v2063 = vmul.f32 1.0, %v2062
    %v2064 = vxor.u32 %v2055, 2147483648
    %v2065 = vmul.f32 %v2064, 1.442695
    %v2066 = vpow.pop %v2065
    %v2067 = vadd.f32 %v2066, 1.0
    %v2068 = vrcp.pop %v2067
    %v2069 = vmul.f32 1.0, %v2068
    %v2070 = vmul.f32 %v2063, %v2057
    %v2071 = vadd.f32 %v2056, %v2070
    %v2072 = vtanh.pop %v2071
    %v2073 = vsub.f32 1.0, %v2069
    %v2074 = vmul.f32 %v2073, %v2072
    %v2075 = vmul.f32 %v2069, %v1876
    %v2076 = vadd.f32 %v2074, %v2075
    %vm2077 = vcmp.eq.s32.totalorder %v75, 7
    %v2078 = vlaneseq
    %v2079 = vshrl.u32 %v2078, 7
    %v2080 = vsub.s32 0, %v2079
    %v2081 = vrot.slane %v2076, %v2080
    %v2082 = vsel %vm2077, %v2081, %v1882
    %2083 = vst [vmem:[#allocation2] sm:$0x1] %v2076
    %2084 = vst [vmem:[#allocation11] sm:$0xff] %v2082
    // Predicated region
    $region38: #{tpu_custom_call.1} parent=1 // pred_check
      _
    $region39: #{tpu_custom_call.1} parent=1 // pred_check_branch
      %2086 = sbr.rel (0) target = $region41
    $region40: #{tpu_custom_call.1} parent=1 // pred_region
      %s2088 = ssub.s32 128, 128
      %2089 = vsyncadd [#allocation7], %s2088
      %s2091 = sshll.u32 [#allocation11], 4
      %s2092 = int_to_ptr.vmem [resolvable:$true] %s2091
      %2094 = dma.vmem_to_hbm [thread:$0]  %s2092, 128, %s6, [#allocation7]
    $region41: #{tpu_custom_call.1} parent=1 // pred_fallthru
      _
    // Predicated region
    $region42: #{tpu_custom_call.1} parent=1 // pred_check
      _
    $region43: #{tpu_custom_call.1} parent=1 // pred_check_branch
      %2096 = sbr.rel (0) target = $region45
    $region44: #{tpu_custom_call.1} parent=1 // pred_region
      %2097 = dma.done [#allocation7], 128
    $region45: #{tpu_custom_call.1} parent=1 // pred_fallthru
      _
    %2098 = vsyncpa [#allocation6], 1
    %2099 = vsyncpa [#allocation9], 1
    %2100 = vsyncpa [#allocation7], 1

</llo_original>
